<compile_context>
chip_gen: v6e
topology: v6e:2x2x1
jax: 0.10.0
libtpu: 0.0.40
codegen_flags: <defaults>
</compile_context>

<pallas_src>
import jax
import jax.numpy as jnp
from jax.experimental import pallas as pl
from jax.experimental.pallas import tpu as pltpu

LANE = 128        # lane width / MXU column granularity
SUBLANE = 8       # f32 sublane minimum (second-to-last dim granularity)
MAX_TILE_B = 256  # batch-tile cap; safe across v5e/v6e (128 MiB) and v7x (64 MiB)
MAX_TILE_K = 2048 # layer-1 reduction tile cap; larger input_dim gets a K grid axis


def _round_up(x, m):
    return (x + m - 1) // m * m


def mlp_kernel(x_ref, w1_ref, b1_ref, w2_ref, b2_ref, w3_ref, b3_ref,
               o_ref, acc_ref):
    """Fused 3-layer MLP. Grid = (batch tiles ["parallel"], layer-1 K tiles ["arbitrary"])."""
    k = pl.program_id(1)

    @pl.when(k == 0)
    def _():
        acc_ref[...] = jnp.zeros_like(acc_ref)

    # Layer 1 partial product: bf16 MXU inputs, explicit f32 accumulation.
    acc_ref[...] += jnp.dot(x_ref[...], w1_ref[...],
                            preferred_element_type=jnp.float32)

    @pl.when(k == pl.num_programs(1) - 1)
    def _():
        # Layer 1 epilogue: bias + ReLU on the f32 accumulator.
        h = jnp.maximum(acc_ref[...] + b1_ref[...], 0.0)
        # Layer 2: Linear + ReLU (bf16 MXU inputs, f32 accumulation).
        h = jnp.dot(h.astype(jnp.bfloat16), w2_ref[...],
                    preferred_element_type=jnp.float32)
        h = jnp.maximum(h + b2_ref[...], 0.0)
        # Final Linear (no activation) -- lane-dense (tile_b, out_pad) f32 store.
        out = jnp.dot(h.astype(jnp.bfloat16), w3_ref[...],
                      preferred_element_type=jnp.float32) + b3_ref[...]
        o_ref[...] = out.astype(o_ref.dtype)


def prepare_params(params, input_dim):
    """One-time param prep (call once, reuse for every forward):

    zero-pad all feature dims to multiples of 128 (exact results -- padded
    columns/rows/bias entries are zero), cast weights to bf16 for the MXU,
    keep biases in f32 (they are added on the f32 accumulator).
    """
    hidden_dim = params["w1"].shape[1]
    output_dim = params["w3"].shape[1]

    in_pad = _round_up(input_dim, LANE)
    if in_pad > MAX_TILE_K:
        in_pad = _round_up(in_pad, MAX_TILE_K)  # K axis uses MAX_TILE_K-wide tiles
    hid_pad = _round_up(hidden_dim, LANE)
    out_pad = _round_up(output_dim, LANE)

    bf16, f32 = jnp.bfloat16, jnp.float32
    w1 = jnp.zeros((in_pad, hid_pad), bf16).at[:input_dim, :hidden_dim].set(
        params["w1"].astype(bf16))
    w2 = jnp.zeros((hid_pad, hid_pad), bf16).at[:hidden_dim, :hidden_dim].set(
        params["w2"].astype(bf16))
    w3 = jnp.zeros((hid_pad, out_pad), bf16).at[:hidden_dim, :output_dim].set(
        params["w3"].astype(bf16))
    b1 = jnp.zeros((1, hid_pad), f32).at[:, :hidden_dim].set(params["b1"].astype(f32))
    b2 = jnp.zeros((1, hid_pad), f32).at[:, :hidden_dim].set(params["b2"].astype(f32))
    b3 = jnp.zeros((1, out_pad), f32).at[:, :output_dim].set(params["b3"].astype(f32))

    return {
        "w1": w1, "b1": b1, "w2": w2, "b2": b2, "w3": w3, "b3": b3,
        "input_dim": input_dim, "hidden_dim": hidden_dim, "output_dim": output_dim,
        "in_pad": in_pad, "hid_pad": hid_pad, "out_pad": out_pad,
    }


def mlp_forward(x, prepped):
    """x: [B, ...] float array (flattened to [B, input_dim]); prepped: prepare_params() output."""
    B = x.shape[0]
    x2d = x.reshape(B, -1)                        # == x.view(x.size(0), -1)
    input_dim = prepped["input_dim"]
    assert x2d.shape[1] == input_dim, (x2d.shape, input_dim)
    in_pad, hid_pad, out_pad = prepped["in_pad"], prepped["hid_pad"], prepped["out_pad"]

    # Batch tiling: tiny batches pad only to the 8-row sublane minimum (1 grid
    # step); large batches use MAX_TILE_B-row tiles so the "parallel" batch axis
    # has >= 2 steps (megacore on v7x) and stores stay big + lane-dense.
    if B <= MAX_TILE_B:
        b_pad = _round_up(max(B, SUBLANE), SUBLANE)
        tile_b = b_pad
    else:
        tile_b = MAX_TILE_B
        b_pad = _round_up(B, tile_b)

    tile_k = min(in_pad, MAX_TILE_K)
    nk = in_pad // tile_k

    # Pad x only where needed (rows always; lanes only if input_dim % 128 != 0),
    # cast to bf16 for the MXU.
    xp = x2d.astype(jnp.bfloat16)
    pad_rows, pad_cols = b_pad - B, in_pad - input_dim
    if pad_rows or pad_cols:
        xp = jnp.pad(xp, ((0, pad_rows), (0, pad_cols)))

    # VMEM budget: weights x1 + biases + double-buffered x/out tiles + f32 acc,
    # with headroom; capped at 48 MiB (safe inside v7x's 64 MiB physical VMEM).
    weight_bytes = (in_pad * hid_pad + hid_pad * hid_pad + hid_pad * out_pad) * 2
    bias_bytes = (2 * hid_pad + out_pad) * 4
    tile_bytes = 2 * (tile_b * tile_k * 2 + tile_b * out_pad * 4)
    acc_bytes = tile_b * hid_pad * 4
    footprint = weight_bytes + bias_bytes + tile_bytes + acc_bytes
    vmem_limit = int(min(max(2 * footprint, 32 << 20), 48 << 20))

    flops = 2 * b_pad * (in_pad * hid_pad + hid_pad * hid_pad + hid_pad * out_pad)
    bytes_accessed = (b_pad * in_pad * 2 + weight_bytes + bias_bytes
                      + b_pad * out_pad * 4)

    def run(single_buffer_weights):
        # Grid-invariant weight/bias blocks never change -> single buffer saves
        # half their VMEM footprint (matters at large hidden/input dims).
        res_kw = {"pipeline_mode": pl.Buffered(1)} if single_buffer_weights else {}
        in_specs = [
            pl.BlockSpec((tile_b, tile_k), lambda i, k: (i, k)),      # x: pipelined
            pl.BlockSpec((tile_k, hid_pad), lambda i, k: (k, 0)),     # w1: varies along K
            pl.BlockSpec((1, hid_pad), lambda i, k: (0, 0), **res_kw),        # b1
            pl.BlockSpec((hid_pad, hid_pad), lambda i, k: (0, 0), **res_kw),  # w2
            pl.BlockSpec((1, hid_pad), lambda i, k: (0, 0), **res_kw),        # b2
            pl.BlockSpec((hid_pad, out_pad), lambda i, k: (0, 0), **res_kw),  # w3
            pl.BlockSpec((1, out_pad), lambda i, k: (0, 0), **res_kw),        # b3
        ]
        return pl.pallas_call(
            mlp_kernel,
            out_shape=jax.ShapeDtypeStruct((b_pad, out_pad), jnp.float32),
            grid=(b_pad // tile_b, nk),
            in_specs=in_specs,
            out_specs=pl.BlockSpec((tile_b, out_pad), lambda i, k: (i, 0)),
            scratch_shapes=[pltpu.VMEM((tile_b, hid_pad), jnp.float32)],
            compiler_params=pltpu.CompilerParams(
                dimension_semantics=("parallel", "arbitrary"),
                vmem_limit_bytes=vmem_limit,
            ),
            cost_estimate=pl.CostEstimate(
                flops=flops, transcendentals=0, bytes_accessed=bytes_accessed),
        )(xp, prepped["w1"], prepped["b1"], prepped["w2"], prepped["b2"],
          prepped["w3"], prepped["b3"])

    try:
        out_padded = run(True)
    except Exception:
        # pipeline_mode=pl.Buffered(1) not supported by this Pallas build ->
        # fall back to default double-buffering (correctness unaffected).
        out_padded = run(False)

    return out_padded[:B, :prepped["output_dim"]]


def xavier_normal(key, fan_out, fan_in):
    # Matches nn.init.xavier_normal_: std = sqrt(2 / (fan_in + fan_out)), gain=1
    std = (2.0 / (fan_in + fan_out)) ** 0.5
    return std * jax.random.normal(key, (fan_out, fan_in), dtype=jnp.float32)


def make_params(key, input_dim, hidden_dim, output_dim):
    k = jax.random.split(key, 6)
    # PyTorch-layout weights [out, in], xavier-normal init (init=True path);
    # biases: PyTorch-default-style uniform ranges.
    w1 = xavier_normal(k[0], hidden_dim, input_dim)
    w2 = xavier_normal(k[1], hidden_dim, hidden_dim)
    w3 = xavier_normal(k[2], output_dim, hidden_dim)
    b1 = jax.random.uniform(k[3], (hidden_dim,), jnp.float32,
                            -1.0 / input_dim ** 0.5, 1.0 / input_dim ** 0.5)
    b2 = jax.random.uniform(k[4], (hidden_dim,), jnp.float32,
                            -1.0 / hidden_dim ** 0.5, 1.0 / hidden_dim ** 0.5)
    b3 = jax.random.uniform(k[5], (output_dim,), jnp.float32,
                            -1.0 / hidden_dim ** 0.5, 1.0 / hidden_dim ** 0.5)
    # Transpose weights to [in, out] for the kernel; biases to [1, out].
    return {
        "w1": w1.T, "b1": b1[None, :],
        "w2": w2.T, "b2": b2[None, :],
        "w3": w3.T, "b3": b3[None, :],
    }


if __name__ == "__main__":
    key = jax.random.PRNGKey(0)
    k_x, k_p = jax.random.split(key)

    # Small shapes: batch=2, channels=4, spatial=16 -> input_dim = 4*16*16 = 1024
    B, C, H, W = 2, 4, 16, 16
    input_dim, hidden_dim, output_dim = C * H * W, 32, 8

    x = jax.random.normal(k_x, (B, C, H, W), dtype=jnp.float32)
    params = make_params(k_p, input_dim, hidden_dim, output_dim)
    prepped = prepare_params(params, input_dim)   # one-time padding/cast, hoisted out of forward

    out = mlp_forward(x, prepped)
    jax.block_until_ready(out)

    # Pure-JAX reference with matching numerics (bf16 matmul inputs, f32 accumulation).
    bf16 = jnp.bfloat16
    x2d = x.reshape(B, -1)
    h = jnp.maximum(jnp.dot(x2d.astype(bf16), params["w1"].astype(bf16),
                            preferred_element_type=jnp.float32) + params["b1"], 0.0)
    h = jnp.maximum(jnp.dot(h.astype(bf16), params["w2"].astype(bf16),
                            preferred_element_type=jnp.float32) + params["b2"], 0.0)
    ref = jnp.dot(h.astype(bf16), params["w3"].astype(bf16),
                  preferred_element_type=jnp.float32) + params["b3"]

    assert out.shape == (B, output_dim)
    assert jnp.allclose(out, ref, atol=1e-2, rtol=1e-2), \
        float(jnp.max(jnp.abs(out - ref)))

    print("KERNEL_OK")
</pallas_src>

<mosaic_0001>
module attributes {stable_mosaic.version = 11 : i64} {
  func.func @mlp_kernel(%arg0: i32, %arg1: i32, %arg2: memref<8x1024xbf16, #tpu.memory_space<vmem>>, %arg3: memref<1024x128xbf16, #tpu.memory_space<vmem>>, %arg4: memref<1x128xf32, #tpu.memory_space<vmem>>, %arg5: memref<128x128xbf16, #tpu.memory_space<vmem>>, %arg6: memref<1x128xf32, #tpu.memory_space<vmem>>, %arg7: memref<128x128xbf16, #tpu.memory_space<vmem>>, %arg8: memref<1x128xf32, #tpu.memory_space<vmem>>, %arg9: memref<8x128xf32, #tpu.memory_space<vmem>>, %arg10: memref<8x128xf32, #tpu.memory_space<vmem>>) attributes {dimension_semantics = [#tpu.dimension_semantics<parallel>, #tpu.dimension_semantics<arbitrary>], iteration_bounds = array<i64: 1, 1>, scalar_prefetch = 0 : i64, scratch_operands = 1 : i64, tpu.core_type = #tpu.core_type<tc>, window_params = [{transform_indices = @transform_0, window_bounds = array<i64: 8, 1024>}, {transform_indices = @transform_1, window_bounds = array<i64: 1024, 128>}, {pipeline_mode = #tpu.pipeline_mode<synchronous>, transform_indices = @transform_2, window_bounds = array<i64: 1, 128>}, {pipeline_mode = #tpu.pipeline_mode<synchronous>, transform_indices = @transform_3, window_bounds = array<i64: 128, 128>}, {pipeline_mode = #tpu.pipeline_mode<synchronous>, transform_indices = @transform_4, window_bounds = array<i64: 1, 128>}, {pipeline_mode = #tpu.pipeline_mode<synchronous>, transform_indices = @transform_5, window_bounds = array<i64: 128, 128>}, {pipeline_mode = #tpu.pipeline_mode<synchronous>, transform_indices = @transform_6, window_bounds = array<i64: 1, 128>}, {transform_indices = @transform_7, window_bounds = array<i64: 8, 128>}]} {
    %c0_i32 = arith.constant 0 : i32
    %0 = arith.cmpi eq, %arg1, %c0_i32 : i32
    %1 = arith.extui %0 : i1 to i32
    %c0_i32_0 = arith.constant 0 : i32
    %2 = arith.cmpi ne, %1, %c0_i32_0 : i32
    scf.if %2 {
      %cst_10 = arith.constant 0.000000e+00 : f32
      %12 = vector.broadcast %cst_10 : f32 to vector<8x128xf32>
      %c0_11 = arith.constant 0 : index
      %c0_12 = arith.constant 0 : index
      %13 = vector.load %arg10[%c0_11, %c0_12] : memref<8x128xf32, #tpu.memory_space<vmem>>, vector<8x128xf32>
      tpu.vector_store %arg10[%c0_11, %c0_12], %12 {strides = array<i32>} : memref<8x128xf32, #tpu.memory_space<vmem>>, vector<8x128xf32>,
    } else {
    }
    %c0 = arith.constant 0 : index
    %c0_1 = arith.constant 0 : index
    %3 = vector.load %arg10[%c0, %c0_1] : memref<8x128xf32, #tpu.memory_space<vmem>>, vector<8x128xf32>
    %c0_2 = arith.constant 0 : index
    %c0_3 = arith.constant 0 : index
    %4 = vector.load %arg2[%c0_2, %c0_3] : memref<8x1024xbf16, #tpu.memory_space<vmem>>, vector<8x1024xbf16>
    %c0_4 = arith.constant 0 : index
    %c0_5 = arith.constant 0 : index
    %5 = vector.load %arg3[%c0_4, %c0_5] : memref<1024x128xbf16, #tpu.memory_space<vmem>>, vector<1024x128xbf16>
    %cst = arith.constant dense<0.000000e+00> : vector<8x128xf32>
    %6 = tpu.matmul %4, %5, %cst {dimension_numbers = #tpu.dot_dimension_numbers<[1], [0], [0], [1], [0, 0, 1, 1], [], []>} : vector<8x1024xbf16>, vector<1024x128xbf16>, vector<8x128xf32> -> vector<8x128xf32>
    %7 = arith.addf %3, %6 : vector<8x128xf32>
    %c0_6 = arith.constant 0 : index
    %c0_7 = arith.constant 0 : index
    %8 = vector.load %arg10[%c0_6, %c0_7] : memref<8x128xf32, #tpu.memory_space<vmem>>, vector<8x128xf32>
    tpu.vector_store %arg10[%c0_6, %c0_7], %7 {strides = array<i32>} : memref<8x128xf32, #tpu.memory_space<vmem>>, vector<8x128xf32>,
    %c0_i32_8 = arith.constant 0 : i32
    %9 = arith.cmpi eq, %arg1, %c0_i32_8 : i32
    %10 = arith.extui %9 : i1 to i32
    %c0_i32_9 = arith.constant 0 : i32
    %11 = arith.cmpi ne, %10, %c0_i32_9 : i32
    scf.if %11 {
      %c0_10 = arith.constant 0 : index
      %c0_11 = arith.constant 0 : index
      %12 = vector.load %arg10[%c0_10, %c0_11] : memref<8x128xf32, #tpu.memory_space<vmem>>, vector<8x128xf32>
      %c0_12 = arith.constant 0 : index
      %c0_13 = arith.constant 0 : index
      %13 = vector.load %arg4[%c0_12, %c0_13] : memref<1x128xf32, #tpu.memory_space<vmem>>, vector<1x128xf32>
      %14 = vector.broadcast %13 : vector<1x128xf32> to vector<8x128xf32>
      %15 = arith.addf %12, %14 : vector<8x128xf32>
      %cst_14 = arith.constant 0.000000e+00 : f32
      %16 = vector.broadcast %cst_14 : f32 to vector<8x128xf32>
      %17 = arith.maximumf %15, %16 : vector<8x128xf32>
      %18 = arith.truncf %17 : vector<8x128xf32> to vector<8x128xbf16>
      %c0_15 = arith.constant 0 : index
      %c0_16 = arith.constant 0 : index
      %19 = vector.load %arg5[%c0_15, %c0_16] : memref<128x128xbf16, #tpu.memory_space<vmem>>, vector<128x128xbf16>
      %cst_17 = arith.constant dense<0.000000e+00> : vector<8x128xf32>
      %20 = tpu.matmul %18, %19, %cst_17 {dimension_numbers = #tpu.dot_dimension_numbers<[1], [0], [0], [1], [0, 0, 1, 1], [], []>} : vector<8x128xbf16>, vector<128x128xbf16>, vector<8x128xf32> -> vector<8x128xf32>
      %c0_18 = arith.constant 0 : index
      %c0_19 = arith.constant 0 : index
      %21 = vector.load %arg6[%c0_18, %c0_19] : memref<1x128xf32, #tpu.memory_space<vmem>>, vector<1x128xf32>
      %22 = vector.broadcast %21 : vector<1x128xf32> to vector<8x128xf32>
      %23 = arith.addf %20, %22 : vector<8x128xf32>
      %cst_20 = arith.constant 0.000000e+00 : f32
      %24 = vector.broadcast %cst_20 : f32 to vector<8x128xf32>
      %25 = arith.maximumf %23, %24 : vector<8x128xf32>
      %26 = arith.truncf %25 : vector<8x128xf32> to vector<8x128xbf16>
      %c0_21 = arith.constant 0 : index
      %c0_22 = arith.constant 0 : index
      %27 = vector.load %arg7[%c0_21, %c0_22] : memref<128x128xbf16, #tpu.memory_space<vmem>>, vector<128x128xbf16>
      %cst_23 = arith.constant dense<0.000000e+00> : vector<8x128xf32>
      %28 = tpu.matmul %26, %27, %cst_23 {dimension_numbers = #tpu.dot_dimension_numbers<[1], [0], [0], [1], [0, 0, 1, 1], [], []>} : vector<8x128xbf16>, vector<128x128xbf16>, vector<8x128xf32> -> vector<8x128xf32>
      %c0_24 = arith.constant 0 : index
      %c0_25 = arith.constant 0 : index
      %29 = vector.load %arg8[%c0_24, %c0_25] : memref<1x128xf32, #tpu.memory_space<vmem>>, vector<1x128xf32>
      %30 = vector.broadcast %29 : vector<1x128xf32> to vector<8x128xf32>
      %31 = arith.addf %28, %30 : vector<8x128xf32>
      %c0_26 = arith.constant 0 : index
      %c0_27 = arith.constant 0 : index
      %32 = vector.load %arg9[%c0_26, %c0_27] : memref<8x128xf32, #tpu.memory_space<vmem>>, vector<8x128xf32>
      tpu.vector_store %arg9[%c0_26, %c0_27], %31 {strides = array<i32>} : memref<8x128xf32, #tpu.memory_space<vmem>>, vector<8x128xf32>,
    } else {
    }
    return
  }
  func.func @transform_0(%arg0: i32, %arg1: i32) -> (i32, i32) {
    %c0_i32 = arith.constant 0 : i32
    return %arg0, %arg1 : i32, i32
  }
  func.func @transform_1(%arg0: i32, %arg1: i32) -> (i32, i32) {
    %c0_i32 = arith.constant 0 : i32
    %c0_i32_0 = arith.constant 0 : i32
    return %arg1, %c0_i32 : i32, i32
  }
  func.func @transform_2(%arg0: i32, %arg1: i32) -> (i32, i32) {
    %c0_i32 = arith.constant 0 : i32
    %c0_i32_0 = arith.constant 0 : i32
    %c0_i32_1 = arith.constant 0 : i32
    return %c0_i32, %c0_i32_0 : i32, i32
  }
  func.func @transform_3(%arg0: i32, %arg1: i32) -> (i32, i32) {
    %c0_i32 = arith.constant 0 : i32
    %c0_i32_0 = arith.constant 0 : i32
    %c0_i32_1 = arith.constant 0 : i32
    return %c0_i32, %c0_i32_0 : i32, i32
  }
  func.func @transform_4(%arg0: i32, %arg1: i32) -> (i32, i32) {
    %c0_i32 = arith.constant 0 : i32
    %c0_i32_0 = arith.constant 0 : i32
    %c0_i32_1 = arith.constant 0 : i32
    return %c0_i32, %c0_i32_0 : i32, i32
  }
  func.func @transform_5(%arg0: i32, %arg1: i32) -> (i32, i32) {
    %c0_i32 = arith.constant 0 : i32
    %c0_i32_0 = arith.constant 0 : i32
    %c0_i32_1 = arith.constant 0 : i32
    return %c0_i32, %c0_i32_0 : i32, i32
  }
  func.func @transform_6(%arg0: i32, %arg1: i32) -> (i32, i32) {
    %c0_i32 = arith.constant 0 : i32
    %c0_i32_0 = arith.constant 0 : i32
    %c0_i32_1 = arith.constant 0 : i32
    return %c0_i32, %c0_i32_0 : i32, i32
  }
  func.func @transform_7(%arg0: i32, %arg1: i32) -> (i32, i32) {
    %c0_i32 = arith.constant 0 : i32
    %c0_i32_0 = arith.constant 0 : i32
    return %arg0, %c0_i32 : i32, i32
  }
}

module attributes {stable_mosaic.version = 11 : i64} {
  func.func @mlp_kernel(%arg0: i32, %arg1: i32, %arg2: memref<8x1024xbf16, #tpu.memory_space<vmem>>, %arg3: memref<1024x128xbf16, #tpu.memory_space<vmem>>, %arg4: memref<1x128xf32, #tpu.memory_space<vmem>>, %arg5: memref<128x128xbf16, #tpu.memory_space<vmem>>, %arg6: memref<1x128xf32, #tpu.memory_space<vmem>>, %arg7: memref<128x128xbf16, #tpu.memory_space<vmem>>, %arg8: memref<1x128xf32, #tpu.memory_space<vmem>>, %arg9: memref<8x128xf32, #tpu.memory_space<vmem>>, %arg10: memref<8x128xf32, #tpu.memory_space<vmem>>) attributes {dimension_semantics = [#tpu.dimension_semantics<parallel>, #tpu.dimension_semantics<arbitrary>], iteration_bounds = array<i64: 1, 1>, scalar_prefetch = 0 : i64, scratch_operands = 1 : i64, tpu.core_type = #tpu.core_type<tc>, window_params = [{transform_indices = @transform_0, window_bounds = array<i64: 8, 1024>}, {transform_indices = @transform_1, window_bounds = array<i64: 1024, 128>}, {pipeline_mode = #tpu.pipeline_mode<synchronous>, transform_indices = @transform_2, window_bounds = array<i64: 1, 128>}, {pipeline_mode = #tpu.pipeline_mode<synchronous>, transform_indices = @transform_3, window_bounds = array<i64: 128, 128>}, {pipeline_mode = #tpu.pipeline_mode<synchronous>, transform_indices = @transform_4, window_bounds = array<i64: 1, 128>}, {pipeline_mode = #tpu.pipeline_mode<synchronous>, transform_indices = @transform_5, window_bounds = array<i64: 128, 128>}, {pipeline_mode = #tpu.pipeline_mode<synchronous>, transform_indices = @transform_6, window_bounds = array<i64: 1, 128>}, {transform_indices = @transform_7, window_bounds = array<i64: 8, 128>}]} {
    %c0_i32 = arith.constant 0 : i32
    %0 = arith.cmpi eq, %arg1, %c0_i32 : i32
    %1 = arith.extui %0 : i1 to i32
    %c0_i32_0 = arith.constant 0 : i32
    %2 = arith.cmpi ne, %1, %c0_i32_0 : i32
    scf.if %2 {
      %cst_10 = arith.constant 0.000000e+00 : f32
      %12 = vector.broadcast %cst_10 : f32 to vector<8x128xf32>
      %c0_11 = arith.constant 0 : index
      %c0_12 = arith.constant 0 : index
      %13 = vector.load %arg10[%c0_11, %c0_12] : memref<8x128xf32, #tpu.memory_space<vmem>>, vector<8x128xf32>
      tpu.vector_store %arg10[%c0_11, %c0_12], %12 {strides = array<i32>} : memref<8x128xf32, #tpu.memory_space<vmem>>, vector<8x128xf32>,
    } else {
    }
    %c0 = arith.constant 0 : index
    %c0_1 = arith.constant 0 : index
    %3 = vector.load %arg10[%c0, %c0_1] : memref<8x128xf32, #tpu.memory_space<vmem>>, vector<8x128xf32>
    %c0_2 = arith.constant 0 : index
    %c0_3 = arith.constant 0 : index
    %4 = vector.load %arg2[%c0_2, %c0_3] : memref<8x1024xbf16, #tpu.memory_space<vmem>>, vector<8x1024xbf16>
    %c0_4 = arith.constant 0 : index
    %c0_5 = arith.constant 0 : index
    %5 = vector.load %arg3[%c0_4, %c0_5] : memref<1024x128xbf16, #tpu.memory_space<vmem>>, vector<1024x128xbf16>
    %cst = arith.constant dense<0.000000e+00> : vector<8x128xf32>
    %6 = tpu.matmul %4, %5, %cst {dimension_numbers = #tpu.dot_dimension_numbers<[1], [0], [0], [1], [0, 0, 1, 1], [], []>} : vector<8x1024xbf16>, vector<1024x128xbf16>, vector<8x128xf32> -> vector<8x128xf32>
    %7 = arith.addf %3, %6 : vector<8x128xf32>
    %c0_6 = arith.constant 0 : index
    %c0_7 = arith.constant 0 : index
    %8 = vector.load %arg10[%c0_6, %c0_7] : memref<8x128xf32, #tpu.memory_space<vmem>>, vector<8x128xf32>
    tpu.vector_store %arg10[%c0_6, %c0_7], %7 {strides = array<i32>} : memref<8x128xf32, #tpu.memory_space<vmem>>, vector<8x128xf32>,
    %c0_i32_8 = arith.constant 0 : i32
    %9 = arith.cmpi eq, %arg1, %c0_i32_8 : i32
    %10 = arith.extui %9 : i1 to i32
    %c0_i32_9 = arith.constant 0 : i32
    %11 = arith.cmpi ne, %10, %c0_i32_9 : i32
    scf.if %11 {
      %c0_10 = arith.constant 0 : index
      %c0_11 = arith.constant 0 : index
      %12 = vector.load %arg10[%c0_10, %c0_11] : memref<8x128xf32, #tpu.memory_space<vmem>>, vector<8x128xf32>
      %c0_12 = arith.constant 0 : index
      %c0_13 = arith.constant 0 : index
      %13 = vector.load %arg4[%c0_12, %c0_13] : memref<1x128xf32, #tpu.memory_space<vmem>>, vector<1x128xf32>
      %14 = vector.broadcast %13 : vector<1x128xf32> to vector<8x128xf32>
      %15 = arith.addf %12, %14 : vector<8x128xf32>
      %cst_14 = arith.constant 0.000000e+00 : f32
      %16 = vector.broadcast %cst_14 : f32 to vector<8x128xf32>
      %17 = arith.maximumf %15, %16 : vector<8x128xf32>
      %18 = arith.truncf %17 : vector<8x128xf32> to vector<8x128xbf16>
      %c0_15 = arith.constant 0 : index
      %c0_16 = arith.constant 0 : index
      %19 = vector.load %arg5[%c0_15, %c0_16] : memref<128x128xbf16, #tpu.memory_space<vmem>>, vector<128x128xbf16>
      %cst_17 = arith.constant dense<0.000000e+00> : vector<8x128xf32>
      %20 = tpu.matmul %18, %19, %cst_17 {dimension_numbers = #tpu.dot_dimension_numbers<[1], [0], [0], [1], [0, 0, 1, 1], [], []>} : vector<8x128xbf16>, vector<128x128xbf16>, vector<8x128xf32> -> vector<8x128xf32>
      %c0_18 = arith.constant 0 : index
      %c0_19 = arith.constant 0 : index
      %21 = vector.load %arg6[%c0_18, %c0_19] : memref<1x128xf32, #tpu.memory_space<vmem>>, vector<1x128xf32>
      %22 = vector.broadcast %21 : vector<1x128xf32> to vector<8x128xf32>
      %23 = arith.addf %20, %22 : vector<8x128xf32>
      %cst_20 = arith.constant 0.000000e+00 : f32
      %24 = vector.broadcast %cst_20 : f32 to vector<8x128xf32>
      %25 = arith.maximumf %23, %24 : vector<8x128xf32>
      %26 = arith.truncf %25 : vector<8x128xf32> to vector<8x128xbf16>
      %c0_21 = arith.constant 0 : index
      %c0_22 = arith.constant 0 : index
      %27 = vector.load %arg7[%c0_21, %c0_22] : memref<128x128xbf16, #tpu.memory_space<vmem>>, vector<128x128xbf16>
      %cst_23 = arith.constant dense<0.000000e+00> : vector<8x128xf32>
      %28 = tpu.matmul %26, %27, %cst_23 {dimension_numbers = #tpu.dot_dimension_numbers<[1], [0], [0], [1], [0, 0, 1, 1], [], []>} : vector<8x128xbf16>, vector<128x128xbf16>, vector<8x128xf32> -> vector<8x128xf32>
      %c0_24 = arith.constant 0 : index
      %c0_25 = arith.constant 0 : index
      %29 = vector.load %arg8[%c0_24, %c0_25] : memref<1x128xf32, #tpu.memory_space<vmem>>, vector<1x128xf32>
      %30 = vector.broadcast %29 : vector<1x128xf32> to vector<8x128xf32>
      %31 = arith.addf %28, %30 : vector<8x128xf32>
      %c0_26 = arith.constant 0 : index
      %c0_27 = arith.constant 0 : index
      %32 = vector.load %arg9[%c0_26, %c0_27] : memref<8x128xf32, #tpu.memory_space<vmem>>, vector<8x128xf32>
      tpu.vector_store %arg9[%c0_26, %c0_27], %31 {strides = array<i32>} : memref<8x128xf32, #tpu.memory_space<vmem>>, vector<8x128xf32>,
    } else {
    }
    return
  }
  func.func @transform_0(%arg0: i32, %arg1: i32) -> (i32, i32) {
    %c0_i32 = arith.constant 0 : i32
    return %arg0, %arg1 : i32, i32
  }
  func.func @transform_1(%arg0: i32, %arg1: i32) -> (i32, i32) {
    %c0_i32 = arith.constant 0 : i32
    %c0_i32_0 = arith.constant 0 : i32
    return %arg1, %c0_i32 : i32, i32
  }
  func.func @transform_2(%arg0: i32, %arg1: i32) -> (i32, i32) {
    %c0_i32 = arith.constant 0 : i32
    %c0_i32_0 = arith.constant 0 : i32
    %c0_i32_1 = arith.constant 0 : i32
    return %c0_i32, %c0_i32_0 : i32, i32
  }
  func.func @transform_3(%arg0: i32, %arg1: i32) -> (i32, i32) {
    %c0_i32 = arith.constant 0 : i32
    %c0_i32_0 = arith.constant 0 : i32
    %c0_i32_1 = arith.constant 0 : i32
    return %c0_i32, %c0_i32_0 : i32, i32
  }
  func.func @transform_4(%arg0: i32, %arg1: i32) -> (i32, i32) {
    %c0_i32 = arith.constant 0 : i32
    %c0_i32_0 = arith.constant 0 : i32
    %c0_i32_1 = arith.constant 0 : i32
    return %c0_i32, %c0_i32_0 : i32, i32
  }
  func.func @transform_5(%arg0: i32, %arg1: i32) -> (i32, i32) {
    %c0_i32 = arith.constant 0 : i32
    %c0_i32_0 = arith.constant 0 : i32
    %c0_i32_1 = arith.constant 0 : i32
    return %c0_i32, %c0_i32_0 : i32, i32
  }
  func.func @transform_6(%arg0: i32, %arg1: i32) -> (i32, i32) {
    %c0_i32 = arith.constant 0 : i32
    %c0_i32_0 = arith.constant 0 : i32
    %c0_i32_1 = arith.constant 0 : i32
    return %c0_i32, %c0_i32_0 : i32, i32
  }
  func.func @transform_7(%arg0: i32, %arg1: i32) -> (i32, i32) {
    %c0_i32 = arith.constant 0 : i32
    %c0_i32_0 = arith.constant 0 : i32
    return %arg0, %c0_i32 : i32, i32
  }
}

</mosaic_0001>

<llo_original>
// kernel: tpu_custom_call.1
$region0: #{tpu_custom_call.1}
  #allocation0 [shape = 'u32[]', space=smem, size = 0x4, offset = 0x4, fixed_abs, tag = 'smem constant byte address 0x4 - core index']
  #allocation1 [shape = 'u32[144,128]{1,0:T(1,128)}', space=vmem, size = 0x12000, scoped, tag = 'internal scratch']
  #allocation2 [shape = 'f32[8,128]{1,0:T(8,128)}', space=vmem, size = 0x1000, scoped, tag = 'scratch operand']
  %s0 = inlined_call_operand.hbm [shape: bf16[8,1024], index: 0, kind: input, shape index: {}]
  %s1 = inlined_call_operand.hbm [shape: bf16[1024,128], index: 1, kind: input, shape index: {}]
  %s2 = inlined_call_operand.vmem [shape: f32[1,128], index: 2, kind: input, shape index: {}]
  %s3 = inlined_call_operand.hbm [shape: bf16[128,128], index: 3, kind: input, shape index: {}]
  %s4 = inlined_call_operand.vmem [shape: f32[1,128], index: 4, kind: input, shape index: {}]
  %s5 = inlined_call_operand.hbm [shape: bf16[128,128], index: 5, kind: input, shape index: {}]
  %s6 = inlined_call_operand.vmem [shape: f32[1,128], index: 6, kind: input, shape index: {}]
  %s7 = inlined_call_operand.hbm [shape: f32[8,128], index: 7, kind: output, shape index: {}]
  %s8 = sld [smem:[#allocation0]]
  $region62: #{tpu_custom_call.1} parent=0
    _
  %s10 = ssub.s32 1, %s8
  %s11 = scalar_select 0, %s10, %s8
  $region1: #{tpu_custom_call.1} parent=0
    #allocation3 [shape = 'u8[16384]{0}', space=vmem, size = 0x4000, scoped, tag = 'input window, operand 0, single buffered']
    #allocation4 [shape = 's32[1]{0}', space=sflag, size = 0x4, scoped, tag = 'scoped memory for tpu_custom_call.1']
    #allocation5 [shape = 's32[1]{0}', space=sflag, size = 0x4, scoped, tag = 'scoped memory for tpu_custom_call.1']
    #allocation6 [shape = 'u8[262144]{0}', space=vmem, size = 0x40000, scoped, tag = 'input window, operand 1, single buffered']
    #allocation7 [shape = 's32[1]{0}', space=sflag, size = 0x4, scoped, tag = 'scoped memory for tpu_custom_call.1']
    #allocation8 [shape = 'u8[32768]{0}', space=vmem, size = 0x8000, scoped, tag = 'input window, operand 3, single buffered']
    #allocation9 [shape = 'u8[32768]{0}', space=vmem, size = 0x8000, scoped, tag = 'input window, operand 5, single buffered']
    #allocation10 [shape = 's32[1]{0}', space=sflag, size = 0x4, scoped, tag = 'scoped memory for tpu_custom_call.1']
    #allocation11 [shape = 'u8[4096]{0}', space=vmem, size = 0x1000, scoped, tag = 'output window, operand 0, single buffered']
    %12 = vsyncpa [#allocation4], 0
    %13 = vsyncpa [#allocation7], 0
    %14 = vsyncpa [#allocation10], 0
    %15 = vsyncpa [#allocation5], 0
    // Predicated region
    $region2: #{tpu_custom_call.1} parent=1 // pred_check
      _
    $region3: #{tpu_custom_call.1} parent=1 // pred_check_branch
      %17 = sbr.rel (0) target = $region5
    $region4: #{tpu_custom_call.1} parent=1 // pred_region
      %s19 = ssub.s32 512, 512
      %20 = vsyncadd [#allocation4], %s19
      %s22 = sshll.u32 [#allocation3], 4
      %s23 = int_to_ptr.vmem [resolvable:$true] %s22
      %25 = dma.hbm_to_vmem [thread:$0]  %s0, 512, %s23, [#allocation4]
    $region5: #{tpu_custom_call.1} parent=1 // pred_fallthru
      _
    // Predicated region
    $region6: #{tpu_custom_call.1} parent=1 // pred_check
      _
    $region7: #{tpu_custom_call.1} parent=1 // pred_check_branch
      %27 = sbr.rel (0) target = $region9
    $region8: #{tpu_custom_call.1} parent=1 // pred_region
      %s29 = ssub.s32 8192, 8192
      %30 = vsyncadd [#allocation7], %s29
      %s31 = sshll.u32 [#allocation6], 4
      %s32 = int_to_ptr.vmem [resolvable:$true] %s31
      %37 = dma.hbm_to_vmem [thread:$0]  %s1, 8192, %s32, [#allocation7], 64, 64, 4
    $region9: #{tpu_custom_call.1} parent=1 // pred_fallthru
      _
    // Predicated region
    $region10: #{tpu_custom_call.1} parent=1 // pred_check
      _
    $region11: #{tpu_custom_call.1} parent=1 // pred_check_branch
      %39 = sbr.rel (0) target = $region13
    $region12: #{tpu_custom_call.1} parent=1 // pred_region
      _
    $region13: #{tpu_custom_call.1} parent=1 // pred_fallthru
      _
    // Predicated region
    $region14: #{tpu_custom_call.1} parent=1 // pred_check
      _
    $region15: #{tpu_custom_call.1} parent=1 // pred_check_branch
      %41 = sbr.rel (0) target = $region17
    $region16: #{tpu_custom_call.1} parent=1 // pred_region
      %s43 = ssub.s32 1024, 1024
      %44 = vsyncadd [#allocation7], %s43
      %s45 = sshll.u32 [#allocation8], 4
      %s46 = int_to_ptr.vmem [resolvable:$true] %s45
      %51 = dma.hbm_to_vmem [thread:$0]  %s3, 1024, %s46, [#allocation7], 64, 64, 4
    $region17: #{tpu_custom_call.1} parent=1 // pred_fallthru
      _
    // Predicated region
    $region18: #{tpu_custom_call.1} parent=1 // pred_check
      _
    $region19: #{tpu_custom_call.1} parent=1 // pred_check_branch
      %53 = sbr.rel (0) target = $region21
    $region20: #{tpu_custom_call.1} parent=1 // pred_region
      _
    $region21: #{tpu_custom_call.1} parent=1 // pred_fallthru
      _
    // Predicated region
    $region22: #{tpu_custom_call.1} parent=1 // pred_check
      _
    $region23: #{tpu_custom_call.1} parent=1 // pred_check_branch
      %55 = sbr.rel (0) target = $region25
    $region24: #{tpu_custom_call.1} parent=1 // pred_region
      %s57 = ssub.s32 1024, 1024
      %58 = vsyncadd [#allocation10], %s57
      %s59 = sshll.u32 [#allocation9], 4
      %s60 = int_to_ptr.vmem [resolvable:$true] %s59
      %65 = dma.hbm_to_vmem [thread:$0]  %s5, 1024, %s60, [#allocation10], 64, 64, 4
    $region25: #{tpu_custom_call.1} parent=1 // pred_fallthru
      _
    // Predicated region
    $region26: #{tpu_custom_call.1} parent=1 // pred_check
      _
    $region27: #{tpu_custom_call.1} parent=1 // pred_check_branch
      %67 = sbr.rel (0) target = $region29
    $region28: #{tpu_custom_call.1} parent=1 // pred_region
      _
    $region29: #{tpu_custom_call.1} parent=1 // pred_fallthru
      _
    // Predicated region
    $region30: #{tpu_custom_call.1} parent=1 // pred_check
      _
    $region31: #{tpu_custom_call.1} parent=1 // pred_check_branch
      %69 = sbr.rel (0) target = $region33
    $region32: #{tpu_custom_call.1} parent=1 // pred_region
      %70 = dma.done [#allocation4], 512
    $region33: #{tpu_custom_call.1} parent=1 // pred_fallthru
      _
    // Predicated region
    $region34: #{tpu_custom_call.1} parent=1 // pred_check
      _
    $region35: #{tpu_custom_call.1} parent=1 // pred_check_branch
      %72 = sbr.rel (0) target = $region37
    $region36: #{tpu_custom_call.1} parent=1 // pred_region
      %73 = dma.done [#allocation7], 8192
    $region37: #{tpu_custom_call.1} parent=1 // pred_fallthru
      _
    // Predicated region
    $region38: #{tpu_custom_call.1} parent=1 // pred_check
      _
    $region39: #{tpu_custom_call.1} parent=1 // pred_check_branch
      %75 = sbr.rel (0) target = $region41
    $region40: #{tpu_custom_call.1} parent=1 // pred_region
      %76 = dma.done [#allocation7], 1024
    $region41: #{tpu_custom_call.1} parent=1 // pred_fallthru
      _
    // Predicated region
    $region42: #{tpu_custom_call.1} parent=1 // pred_check
      _
    $region43: #{tpu_custom_call.1} parent=1 // pred_check_branch
      %78 = sbr.rel (0) target = $region45
    $region44: #{tpu_custom_call.1} parent=1 // pred_region
      %79 = dma.done [#allocation10], 1024
    $region45: #{tpu_custom_call.1} parent=1 // pred_fallthru
      _
    %p81 = scmp.eq.s32.totalorder 0, 0
    // Predicated region
    $region46: #{tpu_custom_call.1} parent=1 // pred_check
      %p82 = pneg %p81
    $region47: #{tpu_custom_call.1} parent=1 // pred_check_branch
      %84 = sbr.rel (%p82) target = $region49
    $region48: #{tpu_custom_call.1} parent=1 // pred_region
      %85 = vst [vmem:[#allocation2] sm:$0xff] 0.0
    $region49: #{tpu_custom_call.1} parent=1 // pred_fallthru
      _
    %v86 = vld [vmem:[#allocation2] sm:$0xff]
    %v87 = vld [vmem:[#allocation3] sm:$0xff]
    %v88 = vld [vmem:[#allocation3 + $0x8] sm:$0xff]
    %v89 = vld [vmem:[#allocation3 + $0x10] sm:$0xff]
    %v90 = vld [vmem:[#allocation3 + $0x18] sm:$0xff]
    %v91 = vld [vmem:[#allocation6] sm:$0xf]
    %v92 = vld [vmem:[#allocation6 + $0x4] sm:$0xf]
    %v93 = vld [vmem:[#allocation6 + $0x8] sm:$0xf]
    %v94 = vld [vmem:[#allocation6 + $0xc] sm:$0xf]
    %v95 = vld [vmem:[#allocation6 + $0x10] sm:$0xf]
    %v96 = vld [vmem:[#allocation6 + $0x14] sm:$0xf]
    %v97 = vld [vmem:[#allocation6 + $0x18] sm:$0xf]
    %v98 = vld [vmem:[#allocation6 + $0x1c] sm:$0xf]
    %v99 = vld [vmem:[#allocation6 + $0x20] sm:$0xf]
    %v100 = vld [vmem:[#allocation6 + $0x24] sm:$0xf]
    %v101 = vld [vmem:[#allocation6 + $0x28] sm:$0xf]
    %v102 = vld [vmem:[#allocation6 + $0x2c] sm:$0xf]
    %v103 = vld [vmem:[#allocation6 + $0x30] sm:$0xf]
    %v104 = vld [vmem:[#allocation6 + $0x34] sm:$0xf]
    %v105 = vld [vmem:[#allocation6 + $0x38] sm:$0xf]
    %v106 = vld [vmem:[#allocation6 + $0x3c] sm:$0xf]
    %v107 = vld [vmem:[#allocation6 + $0x40] sm:$0xf]
    %v108 = vld [vmem:[#allocation6 + $0x44] sm:$0xf]
    %v109 = vld [vmem:[#allocation6 + $0x48] sm:$0xf]
    %v110 = vld [vmem:[#allocation6 + $0x4c] sm:$0xf]
    %v111 = vld [vmem:[#allocation6 + $0x50] sm:$0xf]
    %v112 = vld [vmem:[#allocation6 + $0x54] sm:$0xf]
    %v113 = vld [vmem:[#allocation6 + $0x58] sm:$0xf]
    %v114 = vld [vmem:[#allocation6 + $0x5c] sm:$0xf]
    %v115 = vld [vmem:[#allocation6 + $0x60] sm:$0xf]
    %v116 = vld [vmem:[#allocation6 + $0x64] sm:$0xf]
    %v117 = vld [vmem:[#allocation6 + $0x68] sm:$0xf]
    %v118 = vld [vmem:[#allocation6 + $0x6c] sm:$0xf]
    %v119 = vld [vmem:[#allocation6 + $0x70] sm:$0xf]
    %v120 = vld [vmem:[#allocation6 + $0x74] sm:$0xf]
    %v121 = vld [vmem:[#allocation6 + $0x78] sm:$0xf]
    %v122 = vld [vmem:[#allocation6 + $0x7c] sm:$0xf]
    %v123 = vld [vmem:[#allocation6 + $0x80] sm:$0xf]
    %v124 = vld [vmem:[#allocation6 + $0x84] sm:$0xf]
    %v125 = vld [vmem:[#allocation6 + $0x88] sm:$0xf]
    %v126 = vld [vmem:[#allocation6 + $0x8c] sm:$0xf]
    %v127 = vld [vmem:[#allocation6 + $0x90] sm:$0xf]
    %v128 = vld [vmem:[#allocation6 + $0x94] sm:$0xf]
    %v129 = vld [vmem:[#allocation6 + $0x98] sm:$0xf]
    %v130 = vld [vmem:[#allocation6 + $0x9c] sm:$0xf]
    %v131 = vld [vmem:[#allocation6 + $0xa0] sm:$0xf]
    %v132 = vld [vmem:[#allocation6 + $0xa4] sm:$0xf]
    %v133 = vld [vmem:[#allocation6 + $0xa8] sm:$0xf]
    %v134 = vld [vmem:[#allocation6 + $0xac] sm:$0xf]
    %v135 = vld [vmem:[#allocation6 + $0xb0] sm:$0xf]
    %v136 = vld [vmem:[#allocation6 + $0xb4] sm:$0xf]
    %v137 = vld [vmem:[#allocation6 + $0xb8] sm:$0xf]
    %v138 = vld [vmem:[#allocation6 + $0xbc] sm:$0xf]
    %v139 = vld [vmem:[#allocation6 + $0xc0] sm:$0xf]
    %v140 = vld [vmem:[#allocation6 + $0xc4] sm:$0xf]
    %v141 = vld [vmem:[#allocation6 + $0xc8] sm:$0xf]
    %v142 = vld [vmem:[#allocation6 + $0xcc] sm:$0xf]
    %v143 = vld [vmem:[#allocation6 + $0xd0] sm:$0xf]
    %v144 = vld [vmem:[#allocation6 + $0xd4] sm:$0xf]
    %v145 = vld [vmem:[#allocation6 + $0xd8] sm:$0xf]
    %v146 = vld [vmem:[#allocation6 + $0xdc] sm:$0xf]
    %v147 = vld [vmem:[#allocation6 + $0xe0] sm:$0xf]
    %v148 = vld [vmem:[#allocation6 + $0xe4] sm:$0xf]
    %v149 = vld [vmem:[#allocation6 + $0xe8] sm:$0xf]
    %v150 = vld [vmem:[#allocation6 + $0xec] sm:$0xf]
    %v151 = vld [vmem:[#allocation6 + $0xf0] sm:$0xf]
    %v152 = vld [vmem:[#allocation6 + $0xf4] sm:$0xf]
    %v153 = vld [vmem:[#allocation6 + $0xf8] sm:$0xf]
    %v154 = vld [vmem:[#allocation6 + $0xfc] sm:$0xf]
    %v155 = vld [vmem:[#allocation6 + $0x100] sm:$0xf]
    %v156 = vld [vmem:[#allocation6 + $0x104] sm:$0xf]
    %v157 = vld [vmem:[#allocation6 + $0x108] sm:$0xf]
    %v158 = vld [vmem:[#allocation6 + $0x10c] sm:$0xf]
    %v159 = vld [vmem:[#allocation6 + $0x110] sm:$0xf]
    %v160 = vld [vmem:[#allocation6 + $0x114] sm:$0xf]
    %v161 = vld [vmem:[#allocation6 + $0x118] sm:$0xf]
    %v162 = vld [vmem:[#allocation6 + $0x11c] sm:$0xf]
    %v163 = vld [vmem:[#allocation6 + $0x120] sm:$0xf]
    %v164 = vld [vmem:[#allocation6 + $0x124] sm:$0xf]
    %v165 = vld [vmem:[#allocation6 + $0x128] sm:$0xf]
    %v166 = vld [vmem:[#allocation6 + $0x12c] sm:$0xf]
    %v167 = vld [vmem:[#allocation6 + $0x130] sm:$0xf]
    %v168 = vld [vmem:[#allocation6 + $0x134] sm:$0xf]
    %v169 = vld [vmem:[#allocation6 + $0x138] sm:$0xf]
    %v170 = vld [vmem:[#allocation6 + $0x13c] sm:$0xf]
    %v171 = vld [vmem:[#allocation6 + $0x140] sm:$0xf]
    %v172 = vld [vmem:[#allocation6 + $0x144] sm:$0xf]
    %v173 = vld [vmem:[#allocation6 + $0x148] sm:$0xf]
    %v174 = vld [vmem:[#allocation6 + $0x14c] sm:$0xf]
    %v175 = vld [vmem:[#allocation6 + $0x150] sm:$0xf]
    %v176 = vld [vmem:[#allocation6 + $0x154] sm:$0xf]
    %v177 = vld [vmem:[#allocation6 + $0x158] sm:$0xf]
    %v178 = vld [vmem:[#allocation6 + $0x15c] sm:$0xf]
    %v179 = vld [vmem:[#allocation6 + $0x160] sm:$0xf]
    %v180 = vld [vmem:[#allocation6 + $0x164] sm:$0xf]
    %v181 = vld [vmem:[#allocation6 + $0x168] sm:$0xf]
    %v182 = vld [vmem:[#allocation6 + $0x16c] sm:$0xf]
    %v183 = vld [vmem:[#allocation6 + $0x170] sm:$0xf]
    %v184 = vld [vmem:[#allocation6 + $0x174] sm:$0xf]
    %v185 = vld [vmem:[#allocation6 + $0x178] sm:$0xf]
    %v186 = vld [vmem:[#allocation6 + $0x17c] sm:$0xf]
    %v187 = vld [vmem:[#allocation6 + $0x180] sm:$0xf]
    %v188 = vld [vmem:[#allocation6 + $0x184] sm:$0xf]
    %v189 = vld [vmem:[#allocation6 + $0x188] sm:$0xf]
    %v190 = vld [vmem:[#allocation6 + $0x18c] sm:$0xf]
    %v191 = vld [vmem:[#allocation6 + $0x190] sm:$0xf]
    %v192 = vld [vmem:[#allocation6 + $0x194] sm:$0xf]
    %v193 = vld [vmem:[#allocation6 + $0x198] sm:$0xf]
    %v194 = vld [vmem:[#allocation6 + $0x19c] sm:$0xf]
    %v195 = vld [vmem:[#allocation6 + $0x1a0] sm:$0xf]
    %v196 = vld [vmem:[#allocation6 + $0x1a4] sm:$0xf]
    %v197 = vld [vmem:[#allocation6 + $0x1a8] sm:$0xf]
    %v198 = vld [vmem:[#allocation6 + $0x1ac] sm:$0xf]
    %v199 = vld [vmem:[#allocation6 + $0x1b0] sm:$0xf]
    %v200 = vld [vmem:[#allocation6 + $0x1b4] sm:$0xf]
    %v201 = vld [vmem:[#allocation6 + $0x1b8] sm:$0xf]
    %v202 = vld [vmem:[#allocation6 + $0x1bc] sm:$0xf]
    %v203 = vld [vmem:[#allocation6 + $0x1c0] sm:$0xf]
    %v204 = vld [vmem:[#allocation6 + $0x1c4] sm:$0xf]
    %v205 = vld [vmem:[#allocation6 + $0x1c8] sm:$0xf]
    %v206 = vld [vmem:[#allocation6 + $0x1cc] sm:$0xf]
    %v207 = vld [vmem:[#allocation6 + $0x1d0] sm:$0xf]
    %v208 = vld [vmem:[#allocation6 + $0x1d4] sm:$0xf]
    %v209 = vld [vmem:[#allocation6 + $0x1d8] sm:$0xf]
    %v210 = vld [vmem:[#allocation6 + $0x1dc] sm:$0xf]
    %v211 = vld [vmem:[#allocation6 + $0x1e0] sm:$0xf]
    %v212 = vld [vmem:[#allocation6 + $0x1e4] sm:$0xf]
    %v213 = vld [vmem:[#allocation6 + $0x1e8] sm:$0xf]
    %v214 = vld [vmem:[#allocation6 + $0x1ec] sm:$0xf]
    %v215 = vld [vmem:[#allocation6 + $0x1f0] sm:$0xf]
    %v216 = vld [vmem:[#allocation6 + $0x1f4] sm:$0xf]
    %v217 = vld [vmem:[#allocation6 + $0x1f8] sm:$0xf]
    %v218 = vld [vmem:[#allocation6 + $0x1fc] sm:$0xf]
    %v223 = vunpack.c.l.b16 %v87
    %v224 = vunpack.c.h.b16 %v87
    %v225 = vunpack.c.l.b16 %v88
    %v226 = vunpack.c.h.b16 %v88
    %v227 = vunpack.c.l.b16 %v89
    %v228 = vunpack.c.h.b16 %v89
    %v229 = vunpack.c.l.b16 %v90
    %v230 = vunpack.c.h.b16 %v90
    %v231 = vpack.c.b16 %v223, %v223
    %v232 = vpack.c.b16 %v224, %v224
    %v233 = vpack.c.b16 %v225, %v225
    %v234 = vpack.c.b16 %v226, %v226
    %v235 = vpack.c.b16 %v227, %v227
    %v236 = vpack.c.b16 %v228, %v228
    %v237 = vpack.c.b16 %v229, %v229
    %v238 = vpack.c.b16 %v230, %v230
    %v375 = vunpack.c.l.b16 %v91
    %v376 = vunpack.c.l.b16 %v92
    %v377 = vunpack.c.l.b16 %v93
    %v378 = vunpack.c.l.b16 %v94
    %v379 = vunpack.c.l.b16 %v95
    %v380 = vunpack.c.l.b16 %v96
    %v381 = vunpack.c.l.b16 %v97
    %v382 = vunpack.c.l.b16 %v98
    %v383 = vunpack.c.l.b16 %v99
    %v384 = vunpack.c.l.b16 %v100
    %v385 = vunpack.c.l.b16 %v101
    %v386 = vunpack.c.l.b16 %v102
    %v387 = vunpack.c.l.b16 %v103
    %v388 = vunpack.c.l.b16 %v104
    %v389 = vunpack.c.l.b16 %v105
    %v390 = vunpack.c.l.b16 %v106
    %v391 = vunpack.c.l.b16 %v107
    %v392 = vunpack.c.l.b16 %v108
    %v393 = vunpack.c.l.b16 %v109
    %v394 = vunpack.c.l.b16 %v110
    %v395 = vunpack.c.l.b16 %v111
    %v396 = vunpack.c.l.b16 %v112
    %v397 = vunpack.c.l.b16 %v113
    %v398 = vunpack.c.l.b16 %v114
    %v399 = vunpack.c.l.b16 %v115
    %v400 = vunpack.c.l.b16 %v116
    %v401 = vunpack.c.l.b16 %v117
    %v402 = vunpack.c.l.b16 %v118
    %v403 = vunpack.c.l.b16 %v119
    %v404 = vunpack.c.l.b16 %v120
    %v405 = vunpack.c.l.b16 %v121
    %v406 = vunpack.c.l.b16 %v122
    %v407 = vunpack.c.l.b16 %v123
    %v408 = vunpack.c.l.b16 %v124
    %v409 = vunpack.c.l.b16 %v125
    %v410 = vunpack.c.l.b16 %v126
    %v411 = vunpack.c.l.b16 %v127
    %v412 = vunpack.c.l.b16 %v128
    %v413 = vunpack.c.l.b16 %v129
    %v414 = vunpack.c.l.b16 %v130
    %v415 = vunpack.c.l.b16 %v131
    %v416 = vunpack.c.l.b16 %v132
    %v417 = vunpack.c.l.b16 %v133
    %v418 = vunpack.c.l.b16 %v134
    %v419 = vunpack.c.l.b16 %v135
    %v420 = vunpack.c.l.b16 %v136
    %v421 = vunpack.c.l.b16 %v137
    %v422 = vunpack.c.l.b16 %v138
    %v423 = vunpack.c.l.b16 %v139
    %v424 = vunpack.c.l.b16 %v140
    %v425 = vunpack.c.l.b16 %v141
    %v426 = vunpack.c.l.b16 %v142
    %v427 = vunpack.c.l.b16 %v143
    %v428 = vunpack.c.l.b16 %v144
    %v429 = vunpack.c.l.b16 %v145
    %v430 = vunpack.c.l.b16 %v146
    %v431 = vunpack.c.l.b16 %v147
    %v432 = vunpack.c.l.b16 %v148
    %v433 = vunpack.c.l.b16 %v149
    %v434 = vunpack.c.l.b16 %v150
    %v435 = vunpack.c.l.b16 %v151
    %v436 = vunpack.c.l.b16 %v152
    %v437 = vunpack.c.l.b16 %v153
    %v438 = vunpack.c.l.b16 %v154
    %v439 = vunpack.c.l.b16 %v155
    %v440 = vunpack.c.l.b16 %v156
    %v441 = vunpack.c.l.b16 %v157
    %v442 = vunpack.c.l.b16 %v158
    %v443 = vunpack.c.l.b16 %v159
    %v444 = vunpack.c.l.b16 %v160
    %v445 = vunpack.c.l.b16 %v161
    %v446 = vunpack.c.l.b16 %v162
    %v447 = vunpack.c.l.b16 %v163
    %v448 = vunpack.c.l.b16 %v164
    %v449 = vunpack.c.l.b16 %v165
    %v450 = vunpack.c.l.b16 %v166
    %v451 = vunpack.c.l.b16 %v167
    %v452 = vunpack.c.l.b16 %v168
    %v453 = vunpack.c.l.b16 %v169
    %v454 = vunpack.c.l.b16 %v170
    %v455 = vunpack.c.l.b16 %v171
    %v456 = vunpack.c.l.b16 %v172
    %v457 = vunpack.c.l.b16 %v173
    %v458 = vunpack.c.l.b16 %v174
    %v459 = vunpack.c.l.b16 %v175
    %v460 = vunpack.c.l.b16 %v176
    %v461 = vunpack.c.l.b16 %v177
    %v462 = vunpack.c.l.b16 %v178
    %v463 = vunpack.c.l.b16 %v179
    %v464 = vunpack.c.l.b16 %v180
    %v465 = vunpack.c.l.b16 %v181
    %v466 = vunpack.c.l.b16 %v182
    %v467 = vunpack.c.l.b16 %v183
    %v468 = vunpack.c.l.b16 %v184
    %v469 = vunpack.c.l.b16 %v185
    %v470 = vunpack.c.l.b16 %v186
    %v471 = vunpack.c.l.b16 %v187
    %v472 = vunpack.c.l.b16 %v188
    %v473 = vunpack.c.l.b16 %v189
    %v474 = vunpack.c.l.b16 %v190
    %v475 = vunpack.c.l.b16 %v191
    %v476 = vunpack.c.l.b16 %v192
    %v477 = vunpack.c.l.b16 %v193
    %v478 = vunpack.c.l.b16 %v194
    %v479 = vunpack.c.l.b16 %v195
    %v480 = vunpack.c.l.b16 %v196
    %v481 = vunpack.c.l.b16 %v197
    %v482 = vunpack.c.l.b16 %v198
    %v483 = vunpack.c.l.b16 %v199
    %v484 = vunpack.c.l.b16 %v200
    %v485 = vunpack.c.l.b16 %v201
    %v486 = vunpack.c.l.b16 %v202
    %v487 = vunpack.c.l.b16 %v203
    %v488 = vunpack.c.l.b16 %v204
    %v489 = vunpack.c.l.b16 %v205
    %v490 = vunpack.c.l.b16 %v206
    %v491 = vunpack.c.l.b16 %v207
    %v492 = vunpack.c.l.b16 %v208
    %v493 = vunpack.c.l.b16 %v209
    %v494 = vunpack.c.l.b16 %v210
    %v495 = vunpack.c.l.b16 %v211
    %v496 = vunpack.c.l.b16 %v212
    %v497 = vunpack.c.l.b16 %v213
    %v498 = vunpack.c.l.b16 %v214
    %v499 = vunpack.c.l.b16 %v215
    %v500 = vunpack.c.l.b16 %v216
    %v501 = vunpack.c.l.b16 %v217
    %v502 = vunpack.c.l.b16 %v218
    %v503 = vpack.c.b16 %v376, %v375
    %v504 = vpack.c.b16 %v378, %v377
    %v505 = vpack.c.b16 %v380, %v379
    %v506 = vpack.c.b16 %v382, %v381
    %v507 = vpack.c.b16 %v384, %v383
    %v508 = vpack.c.b16 %v386, %v385
    %v509 = vpack.c.b16 %v388, %v387
    %v510 = vpack.c.b16 %v390, %v389
    %v511 = vpack.c.b16 %v392, %v391
    %v512 = vpack.c.b16 %v394, %v393
    %v513 = vpack.c.b16 %v396, %v395
    %v514 = vpack.c.b16 %v398, %v397
    %v515 = vpack.c.b16 %v400, %v399
    %v516 = vpack.c.b16 %v402, %v401
    %v517 = vpack.c.b16 %v404, %v403
    %v518 = vpack.c.b16 %v406, %v405
    %v519 = vpack.c.b16 %v408, %v407
    %v520 = vpack.c.b16 %v410, %v409
    %v521 = vpack.c.b16 %v412, %v411
    %v522 = vpack.c.b16 %v414, %v413
    %v523 = vpack.c.b16 %v416, %v415
    %v524 = vpack.c.b16 %v418, %v417
    %v525 = vpack.c.b16 %v420, %v419
    %v526 = vpack.c.b16 %v422, %v421
    %v527 = vpack.c.b16 %v424, %v423
    %v528 = vpack.c.b16 %v426, %v425
    %v529 = vpack.c.b16 %v428, %v427
    %v530 = vpack.c.b16 %v430, %v429
    %v531 = vpack.c.b16 %v432, %v431
    %v532 = vpack.c.b16 %v434, %v433
    %v533 = vpack.c.b16 %v436, %v435
    %v534 = vpack.c.b16 %v438, %v437
    %v535 = vpack.c.b16 %v440, %v439
    %v536 = vpack.c.b16 %v442, %v441
    %v537 = vpack.c.b16 %v444, %v443
    %v538 = vpack.c.b16 %v446, %v445
    %v539 = vpack.c.b16 %v448, %v447
    %v540 = vpack.c.b16 %v450, %v449
    %v541 = vpack.c.b16 %v452, %v451
    %v542 = vpack.c.b16 %v454, %v453
    %v543 = vpack.c.b16 %v456, %v455
    %v544 = vpack.c.b16 %v458, %v457
    %v545 = vpack.c.b16 %v460, %v459
    %v546 = vpack.c.b16 %v462, %v461
    %v547 = vpack.c.b16 %v464, %v463
    %v548 = vpack.c.b16 %v466, %v465
    %v549 = vpack.c.b16 %v468, %v467
    %v550 = vpack.c.b16 %v470, %v469
    %v551 = vpack.c.b16 %v472, %v471
    %v552 = vpack.c.b16 %v474, %v473
    %v553 = vpack.c.b16 %v476, %v475
    %v554 = vpack.c.b16 %v478, %v477
    %v555 = vpack.c.b16 %v480, %v479
    %v556 = vpack.c.b16 %v482, %v481
    %v557 = vpack.c.b16 %v484, %v483
    %v558 = vpack.c.b16 %v486, %v485
    %v559 = vpack.c.b16 %v488, %v487
    %v560 = vpack.c.b16 %v490, %v489
    %v561 = vpack.c.b16 %v492, %v491
    %v562 = vpack.c.b16 %v494, %v493
    %v563 = vpack.c.b16 %v496, %v495
    %v564 = vpack.c.b16 %v498, %v497
    %v565 = vpack.c.b16 %v500, %v499
    %v566 = vpack.c.b16 %v502, %v501
    %631 = vmatprep.subr.bf16.mxu0 0
    %632 = vmatpush1.bf16.msra.mxu0 %v510
    %633 = vmatprep.subr.bf16.mxu0 0
    %634 = vmatpush1.bf16.msra.mxu0 %v509
    %635 = vmatprep.subr.bf16.mxu0 0
    %636 = vmatpush1.bf16.msra.mxu0 %v508
    %637 = vmatprep.subr.bf16.mxu0 0
    %638 = vmatpush1.bf16.msra.mxu0 %v507
    %639 = vmatprep.subr.bf16.mxu0 0
    %640 = vmatpush1.bf16.msra.mxu0 %v506
    %641 = vmatprep.subr.bf16.mxu0 0
    %642 = vmatpush1.bf16.msra.mxu0 %v505
    %643 = vmatprep.subr.bf16.mxu0 0
    %644 = vmatpush1.bf16.msra.mxu0 %v504
    %645 = vmatprep.subr.bf16.mxu0 0
    %646 = vmatpush1.bf16.msra.mxu0 %v503
    %647 = vmatprep.subr.bf16.mxu0 0
    %648 = vmatpush2.bf16.msra.mxu0 %v518
    %649 = vmatprep.subr.bf16.mxu0 0
    %650 = vmatpush2.bf16.msra.mxu0 %v517
    %651 = vmatprep.subr.bf16.mxu0 0
    %652 = vmatpush2.bf16.msra.mxu0 %v516
    %653 = vmatprep.subr.bf16.mxu0 0
    %654 = vmatpush2.bf16.msra.mxu0 %v515
    %655 = vmatprep.subr.bf16.mxu0 0
    %656 = vmatpush2.bf16.msra.mxu0 %v514
    %657 = vmatprep.subr.bf16.mxu0 0
    %658 = vmatpush2.bf16.msra.mxu0 %v513
    %659 = vmatprep.subr.bf16.mxu0 0
    %660 = vmatpush2.bf16.msra.mxu0 %v512
    %661 = vmatprep.subr.bf16.mxu0 0
    %662 = vmatpush2.bf16.msra.mxu0 %v511
    %663 = vmatprep.mubr.bf16.mxu0 %v232
    %664 = vmatmul.mubr.bf16.gmra.mxu0 %v231
    %v665 = vpop.f32.mrf.mxu0
    %v666 = vadd.f32 0.0, %v665
    %v667 = vpop.f32.mrf.mxu0
    %v668 = vpop.f32.mrf.mxu0
    %v669 = vpop.f32.mrf.mxu0
    %670 = vdwg.mxu0
    %671 = vmatprep.subr.bf16.mxu0 0
    %672 = vmatpush1.bf16.msra.mxu0 %v526
    %673 = vmatprep.subr.bf16.mxu0 0
    %674 = vmatpush1.bf16.msra.mxu0 %v525
    %675 = vmatprep.subr.bf16.mxu0 0
    %676 = vmatpush1.bf16.msra.mxu0 %v524
    %677 = vmatprep.subr.bf16.mxu0 0
    %678 = vmatpush1.bf16.msra.mxu0 %v523
    %679 = vmatprep.subr.bf16.mxu0 0
    %680 = vmatpush1.bf16.msra.mxu0 %v522
    %681 = vmatprep.subr.bf16.mxu0 0
    %682 = vmatpush1.bf16.msra.mxu0 %v521
    %683 = vmatprep.subr.bf16.mxu0 0
    %684 = vmatpush1.bf16.msra.mxu0 %v520
    %685 = vmatprep.subr.bf16.mxu0 0
    %686 = vmatpush1.bf16.msra.mxu0 %v519
    %687 = vmatprep.subr.bf16.mxu0 0
    %688 = vmatpush2.bf16.msra.mxu0 %v534
    %689 = vmatprep.subr.bf16.mxu0 0
    %690 = vmatpush2.bf16.msra.mxu0 %v533
    %691 = vmatprep.subr.bf16.mxu0 0
    %692 = vmatpush2.bf16.msra.mxu0 %v532
    %693 = vmatprep.subr.bf16.mxu0 0
    %694 = vmatpush2.bf16.msra.mxu0 %v531
    %695 = vmatprep.subr.bf16.mxu0 0
    %696 = vmatpush2.bf16.msra.mxu0 %v530
    %697 = vmatprep.subr.bf16.mxu0 0
    %698 = vmatpush2.bf16.msra.mxu0 %v529
    %699 = vmatprep.subr.bf16.mxu0 0
    %700 = vmatpush2.bf16.msra.mxu0 %v528
    %701 = vmatprep.subr.bf16.mxu0 0
    %702 = vmatpush2.bf16.msra.mxu0 %v527
    %703 = vmatprep.mubr.bf16.mxu0 %v234
    %704 = vmatmul.mubr.bf16.gmra.mxu0 %v233
    %v705 = vpop.f32.mrf.mxu0
    %v706 = vadd.f32 %v666, %v705
    %v707 = vpop.f32.mrf.mxu0
    %v708 = vpop.f32.mrf.mxu0
    %v709 = vpop.f32.mrf.mxu0
    %710 = vdwg.mxu0
    %711 = vmatprep.subr.bf16.mxu0 0
    %712 = vmatpush1.bf16.msra.mxu0 %v542
    %713 = vmatprep.subr.bf16.mxu0 0
    %714 = vmatpush1.bf16.msra.mxu0 %v541
    %715 = vmatprep.subr.bf16.mxu0 0
    %716 = vmatpush1.bf16.msra.mxu0 %v540
    %717 = vmatprep.subr.bf16.mxu0 0
    %718 = vmatpush1.bf16.msra.mxu0 %v539
    %719 = vmatprep.subr.bf16.mxu0 0
    %720 = vmatpush1.bf16.msra.mxu0 %v538
    %721 = vmatprep.subr.bf16.mxu0 0
    %722 = vmatpush1.bf16.msra.mxu0 %v537
    %723 = vmatprep.subr.bf16.mxu0 0
    %724 = vmatpush1.bf16.msra.mxu0 %v536
    %725 = vmatprep.subr.bf16.mxu0 0
    %726 = vmatpush1.bf16.msra.mxu0 %v535
    %727 = vmatprep.subr.bf16.mxu0 0
    %728 = vmatpush2.bf16.msra.mxu0 %v550
    %729 = vmatprep.subr.bf16.mxu0 0
    %730 = vmatpush2.bf16.msra.mxu0 %v549
    %731 = vmatprep.subr.bf16.mxu0 0
    %732 = vmatpush2.bf16.msra.mxu0 %v548
    %733 = vmatprep.subr.bf16.mxu0 0
    %734 = vmatpush2.bf16.msra.mxu0 %v547
    %735 = vmatprep.subr.bf16.mxu0 0
    %736 = vmatpush2.bf16.msra.mxu0 %v546
    %737 = vmatprep.subr.bf16.mxu0 0
    %738 = vmatpush2.bf16.msra.mxu0 %v545
    %739 = vmatprep.subr.bf16.mxu0 0
    %740 = vmatpush2.bf16.msra.mxu0 %v544
    %741 = vmatprep.subr.bf16.mxu0 0
    %742 = vmatpush2.bf16.msra.mxu0 %v543
    %743 = vmatprep.mubr.bf16.mxu0 %v236
    %744 = vmatmul.mubr.bf16.gmra.mxu0 %v235
    %v745 = vpop.f32.mrf.mxu0
    %v746 = vadd.f32 %v706, %v745
    %v747 = vpop.f32.mrf.mxu0
    %v748 = vpop.f32.mrf.mxu0
    %v749 = vpop.f32.mrf.mxu0
    %750 = vdwg.mxu0
    %751 = vmatprep.subr.bf16.mxu0 0
    %752 = vmatpush1.bf16.msra.mxu0 %v558
    %753 = vmatprep.subr.bf16.mxu0 0
    %754 = vmatpush1.bf16.msra.mxu0 %v557
    %755 = vmatprep.subr.bf16.mxu0 0
    %756 = vmatpush1.bf16.msra.mxu0 %v556
    %757 = vmatprep.subr.bf16.mxu0 0
    %758 = vmatpush1.bf16.msra.mxu0 %v555
    %759 = vmatprep.subr.bf16.mxu0 0
    %760 = vmatpush1.bf16.msra.mxu0 %v554
    %761 = vmatprep.subr.bf16.mxu0 0
    %762 = vmatpush1.bf16.msra.mxu0 %v553
    %763 = vmatprep.subr.bf16.mxu0 0
    %764 = vmatpush1.bf16.msra.mxu0 %v552
    %765 = vmatprep.subr.bf16.mxu0 0
    %766 = vmatpush1.bf16.msra.mxu0 %v551
    %767 = vmatprep.subr.bf16.mxu0 0
    %768 = vmatpush2.bf16.msra.mxu0 %v566
    %769 = vmatprep.subr.bf16.mxu0 0
    %770 = vmatpush2.bf16.msra.mxu0 %v565
    %771 = vmatprep.subr.bf16.mxu0 0
    %772 = vmatpush2.bf16.msra.mxu0 %v564
    %773 = vmatprep.subr.bf16.mxu0 0
    %774 = vmatpush2.bf16.msra.mxu0 %v563
    %775 = vmatprep.subr.bf16.mxu0 0
    %776 = vmatpush2.bf16.msra.mxu0 %v562
    %777 = vmatprep.subr.bf16.mxu0 0
    %778 = vmatpush2.bf16.msra.mxu0 %v561
    %779 = vmatprep.subr.bf16.mxu0 0
    %780 = vmatpush2.bf16.msra.mxu0 %v560
    %781 = vmatprep.subr.bf16.mxu0 0
    %782 = vmatpush2.bf16.msra.mxu0 %v559
    %783 = vmatprep.mubr.bf16.mxu0 %v238
    %784 = vmatmul.mubr.bf16.gmra.mxu0 %v237
    %v785 = vpop.f32.mrf.mxu0
    %v786 = vadd.f32 %v746, %v785
    %v787 = vpop.f32.mrf.mxu0
    %v788 = vpop.f32.mrf.mxu0
    %v789 = vpop.f32.mrf.mxu0
    %790 = vdwg.mxu0
    %v791 = vadd.f32 %v86, %v786
    %792 = vst [vmem:[#allocation2] sm:$0xff] %v791
    // Predicated region
    $region50: #{tpu_custom_call.1} parent=1 // pred_check
      %p793 = pneg %p81
    $region51: #{tpu_custom_call.1} parent=1 // pred_check_branch
      %795 = sbr.rel (%p793) target = $region53
    $region52: #{tpu_custom_call.1} parent=1 // pred_region
      %v796 = vld [vmem:[#allocation2] sm:$0xff]
      %v797 = vld [vmem:[%s2] sm:$0x1]
      %v799 = vlaneseq
      %v800 = vshrl.u32 %v799, 7
      %v801 = vsub.s32 0, %v800
      %v802 = vrot.slane %v797, %v801
      %v804 = vadd.f32 %v796, %v802
      %v805 = vmax.f32 %v804, 0.0
      %v806 = vpack.c.bf16 %v805, %v805
      %v807 = vld [vmem:[#allocation8] sm:$0xf]
      %v808 = vld [vmem:[#allocation8 + $0x4] sm:$0xf]
      %v809 = vld [vmem:[#allocation8 + $0x8] sm:$0xf]
      %v810 = vld [vmem:[#allocation8 + $0xc] sm:$0xf]
      %v811 = vld [vmem:[#allocation8 + $0x10] sm:$0xf]
      %v812 = vld [vmem:[#allocation8 + $0x14] sm:$0xf]
      %v813 = vld [vmem:[#allocation8 + $0x18] sm:$0xf]
      %v814 = vld [vmem:[#allocation8 + $0x1c] sm:$0xf]
      %v815 = vld [vmem:[#allocation8 + $0x20] sm:$0xf]
      %v816 = vld [vmem:[#allocation8 + $0x24] sm:$0xf]
      %v817 = vld [vmem:[#allocation8 + $0x28] sm:$0xf]
      %v818 = vld [vmem:[#allocation8 + $0x2c] sm:$0xf]
      %v819 = vld [vmem:[#allocation8 + $0x30] sm:$0xf]
      %v820 = vld [vmem:[#allocation8 + $0x34] sm:$0xf]
      %v821 = vld [vmem:[#allocation8 + $0x38] sm:$0xf]
      %v822 = vld [vmem:[#allocation8 + $0x3c] sm:$0xf]
      %v823 = vld [vmem:[%s4] sm:$0x1]
      %v825 = vlaneseq
      %v826 = vshrl.u32 %v825, 7
      %v827 = vsub.s32 0, %v826
      %v828 = vrot.slane %v823, %v827
      %v846 = vunpack.c.l.b16 %v807
      %v847 = vunpack.c.l.b16 %v808
      %v848 = vunpack.c.l.b16 %v809
      %v849 = vunpack.c.l.b16 %v810
      %v850 = vunpack.c.l.b16 %v811
      %v851 = vunpack.c.l.b16 %v812
      %v852 = vunpack.c.l.b16 %v813
      %v853 = vunpack.c.l.b16 %v814
      %v854 = vunpack.c.l.b16 %v815
      %v855 = vunpack.c.l.b16 %v816
      %v856 = vunpack.c.l.b16 %v817
      %v857 = vunpack.c.l.b16 %v818
      %v858 = vunpack.c.l.b16 %v819
      %v859 = vunpack.c.l.b16 %v820
      %v860 = vunpack.c.l.b16 %v821
      %v861 = vunpack.c.l.b16 %v822
      %v862 = vpack.c.b16 %v847, %v846
      %v863 = vpack.c.b16 %v849, %v848
      %v864 = vpack.c.b16 %v851, %v850
      %v865 = vpack.c.b16 %v853, %v852
      %v866 = vpack.c.b16 %v855, %v854
      %v867 = vpack.c.b16 %v857, %v856
      %v868 = vpack.c.b16 %v859, %v858
      %v869 = vpack.c.b16 %v861, %v860
      %878 = vmatprep.subr.bf16.mxu0 0
      %879 = vmatpush1.bf16.msra.mxu0 %v869
      %880 = vmatprep.subr.bf16.mxu0 0
      %881 = vmatpush1.bf16.msra.mxu0 %v868
      %882 = vmatprep.subr.bf16.mxu0 0
      %883 = vmatpush1.bf16.msra.mxu0 %v867
      %884 = vmatprep.subr.bf16.mxu0 0
      %885 = vmatpush1.bf16.msra.mxu0 %v866
      %886 = vmatprep.subr.bf16.mxu0 0
      %887 = vmatpush1.bf16.msra.mxu0 %v865
      %888 = vmatprep.subr.bf16.mxu0 0
      %889 = vmatpush1.bf16.msra.mxu0 %v864
      %890 = vmatprep.subr.bf16.mxu0 0
      %891 = vmatpush1.bf16.msra.mxu0 %v863
      %892 = vmatprep.subr.bf16.mxu0 0
      %893 = vmatpush1.bf16.msra.mxu0 %v862
      %894 = vmatprep.subr.bf16.mxu0 0
      %895 = vmatpush2.bf16.msra.mxu0 0
      %896 = vmatprep.subr.bf16.mxu0 0
      %897 = vmatpush2.bf16.msra.mxu0 0
      %898 = vmatprep.subr.bf16.mxu0 0
      %899 = vmatpush2.bf16.msra.mxu0 0
      %900 = vmatprep.subr.bf16.mxu0 0
      %901 = vmatpush2.bf16.msra.mxu0 0
      %902 = vmatprep.subr.bf16.mxu0 0
      %903 = vmatpush2.bf16.msra.mxu0 0
      %904 = vmatprep.subr.bf16.mxu0 0
      %905 = vmatpush2.bf16.msra.mxu0 0
      %906 = vmatprep.subr.bf16.mxu0 0
      %907 = vmatpush2.bf16.msra.mxu0 0
      %908 = vmatprep.subr.bf16.mxu0 0
      %909 = vmatpush2.bf16.msra.mxu0 0
      %910 = vmatprep.mubr.bf16.mxu0 0
      %911 = vmatmul.mubr.bf16.gmra.mxu0 %v806
      %v912 = vpop.f32.mrf.mxu0
      %v913 = vadd.f32 %v828, %v912
      %v914 = vpop.f32.mrf.mxu0
      %v915 = vpop.f32.mrf.mxu0
      %v916 = vpop.f32.mrf.mxu0
      %917 = vdwg.mxu0
      %v918 = vmax.f32 %v913, 0.0
      %v919 = vpack.c.bf16 %v918, %v918
      %v920 = vld [vmem:[#allocation9] sm:$0xf]
      %v921 = vld [vmem:[#allocation9 + $0x4] sm:$0xf]
      %v922 = vld [vmem:[#allocation9 + $0x8] sm:$0xf]
      %v923 = vld [vmem:[#allocation9 + $0xc] sm:$0xf]
      %v924 = vld [vmem:[#allocation9 + $0x10] sm:$0xf]
      %v925 = vld [vmem:[#allocation9 + $0x14] sm:$0xf]
      %v926 = vld [vmem:[#allocation9 + $0x18] sm:$0xf]
      %v927 = vld [vmem:[#allocation9 + $0x1c] sm:$0xf]
      %v928 = vld [vmem:[#allocation9 + $0x20] sm:$0xf]
      %v929 = vld [vmem:[#allocation9 + $0x24] sm:$0xf]
      %v930 = vld [vmem:[#allocation9 + $0x28] sm:$0xf]
      %v931 = vld [vmem:[#allocation9 + $0x2c] sm:$0xf]
      %v932 = vld [vmem:[#allocation9 + $0x30] sm:$0xf]
      %v933 = vld [vmem:[#allocation9 + $0x34] sm:$0xf]
      %v934 = vld [vmem:[#allocation9 + $0x38] sm:$0xf]
      %v935 = vld [vmem:[#allocation9 + $0x3c] sm:$0xf]
      %v936 = vld [vmem:[%s6] sm:$0x1]
      %v938 = vlaneseq
      %v939 = vshrl.u32 %v938, 7
      %v940 = vsub.s32 0, %v939
      %v941 = vrot.slane %v936, %v940
      %v959 = vunpack.c.l.b16 %v920
      %v960 = vunpack.c.l.b16 %v921
      %v961 = vunpack.c.l.b16 %v922
      %v962 = vunpack.c.l.b16 %v923
      %v963 = vunpack.c.l.b16 %v924
      %v964 = vunpack.c.l.b16 %v925
      %v965 = vunpack.c.l.b16 %v926
      %v966 = vunpack.c.l.b16 %v927
      %v967 = vunpack.c.l.b16 %v928
      %v968 = vunpack.c.l.b16 %v929
      %v969 = vunpack.c.l.b16 %v930
      %v970 = vunpack.c.l.b16 %v931
      %v971 = vunpack.c.l.b16 %v932
      %v972 = vunpack.c.l.b16 %v933
      %v973 = vunpack.c.l.b16 %v934
      %v974 = vunpack.c.l.b16 %v935
      %v975 = vpack.c.b16 %v960, %v959
      %v976 = vpack.c.b16 %v962, %v961
      %v977 = vpack.c.b16 %v964, %v963
      %v978 = vpack.c.b16 %v966, %v965
      %v979 = vpack.c.b16 %v968, %v967
      %v980 = vpack.c.b16 %v970, %v969
      %v981 = vpack.c.b16 %v972, %v971
      %v982 = vpack.c.b16 %v974, %v973
      %991 = vmatprep.subr.bf16.mxu0 0
      %992 = vmatpush1.bf16.msra.mxu0 %v982
      %993 = vmatprep.subr.bf16.mxu0 0
      %994 = vmatpush1.bf16.msra.mxu0 %v981
      %995 = vmatprep.subr.bf16.mxu0 0
      %996 = vmatpush1.bf16.msra.mxu0 %v980
      %997 = vmatprep.subr.bf16.mxu0 0
      %998 = vmatpush1.bf16.msra.mxu0 %v979
      %999 = vmatprep.subr.bf16.mxu0 0
      %1000 = vmatpush1.bf16.msra.mxu0 %v978
      %1001 = vmatprep.subr.bf16.mxu0 0
      %1002 = vmatpush1.bf16.msra.mxu0 %v977
      %1003 = vmatprep.subr.bf16.mxu0 0
      %1004 = vmatpush1.bf16.msra.mxu0 %v976
      %1005 = vmatprep.subr.bf16.mxu0 0
      %1006 = vmatpush1.bf16.msra.mxu0 %v975
      %1007 = vmatprep.subr.bf16.mxu0 0
      %1008 = vmatpush2.bf16.msra.mxu0 0
      %1009 = vmatprep.subr.bf16.mxu0 0
      %1010 = vmatpush2.bf16.msra.mxu0 0
      %1011 = vmatprep.subr.bf16.mxu0 0
      %1012 = vmatpush2.bf16.msra.mxu0 0
      %1013 = vmatprep.subr.bf16.mxu0 0
      %1014 = vmatpush2.bf16.msra.mxu0 0
      %1015 = vmatprep.subr.bf16.mxu0 0
      %1016 = vmatpush2.bf16.msra.mxu0 0
      %1017 = vmatprep.subr.bf16.mxu0 0
      %1018 = vmatpush2.bf16.msra.mxu0 0
      %1019 = vmatprep.subr.bf16.mxu0 0
      %1020 = vmatpush2.bf16.msra.mxu0 0
      %1021 = vmatprep.subr.bf16.mxu0 0
      %1022 = vmatpush2.bf16.msra.mxu0 0
      %1023 = vmatprep.mubr.bf16.mxu0 0
      %1024 = vmatmul.mubr.bf16.gmra.mxu0 %v919
      %v1025 = vpop.f32.mrf.mxu0
      %v1026 = vadd.f32 %v941, %v1025
      %v1027 = vpop.f32.mrf.mxu0
      %v1028 = vpop.f32.mrf.mxu0
      %v1029 = vpop.f32.mrf.mxu0
      %1030 = vdwg.mxu0
      %1031 = vst [vmem:[#allocation11] sm:$0xff] %v1026
    $region53: #{tpu_custom_call.1} parent=1 // pred_fallthru
      _
    // Predicated region
    $region54: #{tpu_custom_call.1} parent=1 // pred_check
      _
    $region55: #{tpu_custom_call.1} parent=1 // pred_check_branch
      %1033 = sbr.rel (0) target = $region57
    $region56: #{tpu_custom_call.1} parent=1 // pred_region
      %s1035 = ssub.s32 128, 128
      %1036 = vsyncadd [#allocation5], %s1035
      %s1038 = sshll.u32 [#allocation11], 4
      %s1039 = int_to_ptr.vmem [resolvable:$true] %s1038
      %1041 = dma.vmem_to_hbm [thread:$0]  %s1039, 128, %s7, [#allocation5]
    $region57: #{tpu_custom_call.1} parent=1 // pred_fallthru
      _
    // Predicated region
    $region58: #{tpu_custom_call.1} parent=1 // pred_check
      _
    $region59: #{tpu_custom_call.1} parent=1 // pred_check_branch
      %1043 = sbr.rel (0) target = $region61
    $region60: #{tpu_custom_call.1} parent=1 // pred_region
      %1044 = dma.done [#allocation5], 128
    $region61: #{tpu_custom_call.1} parent=1 // pred_fallthru
      _
    %1045 = vsyncpa [#allocation4], 1
    %1046 = vsyncpa [#allocation7], 1
    %1047 = vsyncpa [#allocation10], 1
    %1048 = vsyncpa [#allocation5], 1

// kernel: tpu_custom_call.1
$region0: #{tpu_custom_call.1}
  #allocation0 [shape = 'u32[]', space=smem, size = 0x4, offset = 0x4, fixed_abs, tag = 'smem constant byte address 0x4 - core index']
  #allocation1 [shape = 'u32[144,128]{1,0:T(1,128)}', space=vmem, size = 0x12000, scoped, tag = 'internal scratch']
  #allocation2 [shape = 'f32[8,128]{1,0:T(8,128)}', space=vmem, size = 0x1000, scoped, tag = 'scratch operand']
  %s0 = inlined_call_operand.hbm [shape: bf16[8,1024], index: 0, kind: input, shape index: {}]
  %s1 = inlined_call_operand.hbm [shape: bf16[1024,128], index: 1, kind: input, shape index: {}]
  %s2 = inlined_call_operand.vmem [shape: f32[1,128], index: 2, kind: input, shape index: {}]
  %s3 = inlined_call_operand.hbm [shape: bf16[128,128], index: 3, kind: input, shape index: {}]
  %s4 = inlined_call_operand.vmem [shape: f32[1,128], index: 4, kind: input, shape index: {}]
  %s5 = inlined_call_operand.hbm [shape: bf16[128,128], index: 5, kind: input, shape index: {}]
  %s6 = inlined_call_operand.vmem [shape: f32[1,128], index: 6, kind: input, shape index: {}]
  %s7 = inlined_call_operand.hbm [shape: f32[8,128], index: 7, kind: output, shape index: {}]
  %s8 = sld [smem:[#allocation0]]
  $region62: #{tpu_custom_call.1} parent=0
    _
  %s10 = ssub.s32 1, %s8
  %s11 = scalar_select 0, %s10, %s8
  $region1: #{tpu_custom_call.1} parent=0
    #allocation3 [shape = 'u8[16384]{0}', space=vmem, size = 0x4000, scoped, tag = 'input window, operand 0, single buffered']
    #allocation4 [shape = 's32[1]{0}', space=sflag, size = 0x4, scoped, tag = 'scoped memory for tpu_custom_call.1']
    #allocation5 [shape = 's32[1]{0}', space=sflag, size = 0x4, scoped, tag = 'scoped memory for tpu_custom_call.1']
    #allocation6 [shape = 'u8[262144]{0}', space=vmem, size = 0x40000, scoped, tag = 'input window, operand 1, single buffered']
    #allocation7 [shape = 's32[1]{0}', space=sflag, size = 0x4, scoped, tag = 'scoped memory for tpu_custom_call.1']
    #allocation8 [shape = 'u8[32768]{0}', space=vmem, size = 0x8000, scoped, tag = 'input window, operand 3, single buffered']
    #allocation9 [shape = 'u8[32768]{0}', space=vmem, size = 0x8000, scoped, tag = 'input window, operand 5, single buffered']
    #allocation10 [shape = 's32[1]{0}', space=sflag, size = 0x4, scoped, tag = 'scoped memory for tpu_custom_call.1']
    #allocation11 [shape = 'u8[4096]{0}', space=vmem, size = 0x1000, scoped, tag = 'output window, operand 0, single buffered']
    %12 = vsyncpa [#allocation4], 0
    %13 = vsyncpa [#allocation7], 0
    %14 = vsyncpa [#allocation10], 0
    %15 = vsyncpa [#allocation5], 0
    // Predicated region
    $region2: #{tpu_custom_call.1} parent=1 // pred_check
      _
    $region3: #{tpu_custom_call.1} parent=1 // pred_check_branch
      %17 = sbr.rel (0) target = $region5
    $region4: #{tpu_custom_call.1} parent=1 // pred_region
      %s19 = ssub.s32 512, 512
      %20 = vsyncadd [#allocation4], %s19
      %s22 = sshll.u32 [#allocation3], 4
      %s23 = int_to_ptr.vmem [resolvable:$true] %s22
      %25 = dma.hbm_to_vmem [thread:$0]  %s0, 512, %s23, [#allocation4]
    $region5: #{tpu_custom_call.1} parent=1 // pred_fallthru
      _
    // Predicated region
    $region6: #{tpu_custom_call.1} parent=1 // pred_check
      _
    $region7: #{tpu_custom_call.1} parent=1 // pred_check_branch
      %27 = sbr.rel (0) target = $region9
    $region8: #{tpu_custom_call.1} parent=1 // pred_region
      %s29 = ssub.s32 8192, 8192
      %30 = vsyncadd [#allocation7], %s29
      %s31 = sshll.u32 [#allocation6], 4
      %s32 = int_to_ptr.vmem [resolvable:$true] %s31
      %37 = dma.hbm_to_vmem [thread:$0]  %s1, 8192, %s32, [#allocation7], 64, 64, 4
    $region9: #{tpu_custom_call.1} parent=1 // pred_fallthru
      _
    // Predicated region
    $region10: #{tpu_custom_call.1} parent=1 // pred_check
      _
    $region11: #{tpu_custom_call.1} parent=1 // pred_check_branch
      %39 = sbr.rel (0) target = $region13
    $region12: #{tpu_custom_call.1} parent=1 // pred_region
      _
    $region13: #{tpu_custom_call.1} parent=1 // pred_fallthru
      _
    // Predicated region
    $region14: #{tpu_custom_call.1} parent=1 // pred_check
      _
    $region15: #{tpu_custom_call.1} parent=1 // pred_check_branch
      %41 = sbr.rel (0) target = $region17
    $region16: #{tpu_custom_call.1} parent=1 // pred_region
      %s43 = ssub.s32 1024, 1024
      %44 = vsyncadd [#allocation7], %s43
      %s45 = sshll.u32 [#allocation8], 4
      %s46 = int_to_ptr.vmem [resolvable:$true] %s45
      %51 = dma.hbm_to_vmem [thread:$0]  %s3, 1024, %s46, [#allocation7], 64, 64, 4
    $region17: #{tpu_custom_call.1} parent=1 // pred_fallthru
      _
    // Predicated region
    $region18: #{tpu_custom_call.1} parent=1 // pred_check
      _
    $region19: #{tpu_custom_call.1} parent=1 // pred_check_branch
      %53 = sbr.rel (0) target = $region21
    $region20: #{tpu_custom_call.1} parent=1 // pred_region
      _
    $region21: #{tpu_custom_call.1} parent=1 // pred_fallthru
      _
    // Predicated region
    $region22: #{tpu_custom_call.1} parent=1 // pred_check
      _
    $region23: #{tpu_custom_call.1} parent=1 // pred_check_branch
      %55 = sbr.rel (0) target = $region25
    $region24: #{tpu_custom_call.1} parent=1 // pred_region
      %s57 = ssub.s32 1024, 1024
      %58 = vsyncadd [#allocation10], %s57
      %s59 = sshll.u32 [#allocation9], 4
      %s60 = int_to_ptr.vmem [resolvable:$true] %s59
      %65 = dma.hbm_to_vmem [thread:$0]  %s5, 1024, %s60, [#allocation10], 64, 64, 4
    $region25: #{tpu_custom_call.1} parent=1 // pred_fallthru
      _
    // Predicated region
    $region26: #{tpu_custom_call.1} parent=1 // pred_check
      _
    $region27: #{tpu_custom_call.1} parent=1 // pred_check_branch
      %67 = sbr.rel (0) target = $region29
    $region28: #{tpu_custom_call.1} parent=1 // pred_region
      _
    $region29: #{tpu_custom_call.1} parent=1 // pred_fallthru
      _
    // Predicated region
    $region30: #{tpu_custom_call.1} parent=1 // pred_check
      _
    $region31: #{tpu_custom_call.1} parent=1 // pred_check_branch
      %69 = sbr.rel (0) target = $region33
    $region32: #{tpu_custom_call.1} parent=1 // pred_region
      %70 = dma.done [#allocation4], 512
    $region33: #{tpu_custom_call.1} parent=1 // pred_fallthru
      _
    // Predicated region
    $region34: #{tpu_custom_call.1} parent=1 // pred_check
      _
    $region35: #{tpu_custom_call.1} parent=1 // pred_check_branch
      %72 = sbr.rel (0) target = $region37
    $region36: #{tpu_custom_call.1} parent=1 // pred_region
      %73 = dma.done [#allocation7], 8192
    $region37: #{tpu_custom_call.1} parent=1 // pred_fallthru
      _
    // Predicated region
    $region38: #{tpu_custom_call.1} parent=1 // pred_check
      _
    $region39: #{tpu_custom_call.1} parent=1 // pred_check_branch
      %75 = sbr.rel (0) target = $region41
    $region40: #{tpu_custom_call.1} parent=1 // pred_region
      %76 = dma.done [#allocation7], 1024
    $region41: #{tpu_custom_call.1} parent=1 // pred_fallthru
      _
    // Predicated region
    $region42: #{tpu_custom_call.1} parent=1 // pred_check
      _
    $region43: #{tpu_custom_call.1} parent=1 // pred_check_branch
      %78 = sbr.rel (0) target = $region45
    $region44: #{tpu_custom_call.1} parent=1 // pred_region
      %79 = dma.done [#allocation10], 1024
    $region45: #{tpu_custom_call.1} parent=1 // pred_fallthru
      _
    %p81 = scmp.eq.s32.totalorder 0, 0
    // Predicated region
    $region46: #{tpu_custom_call.1} parent=1 // pred_check
      %p82 = pneg %p81
    $region47: #{tpu_custom_call.1} parent=1 // pred_check_branch
      %84 = sbr.rel (%p82) target = $region49
    $region48: #{tpu_custom_call.1} parent=1 // pred_region
      %85 = vst [vmem:[#allocation2] sm:$0xff] 0.0
    $region49: #{tpu_custom_call.1} parent=1 // pred_fallthru
      _
    %v86 = vld [vmem:[#allocation2] sm:$0xff]
    %v87 = vld [vmem:[#allocation3] sm:$0xff]
    %v88 = vld [vmem:[#allocation3 + $0x8] sm:$0xff]
    %v89 = vld [vmem:[#allocation3 + $0x10] sm:$0xff]
    %v90 = vld [vmem:[#allocation3 + $0x18] sm:$0xff]
    %v91 = vld [vmem:[#allocation6] sm:$0xf]
    %v92 = vld [vmem:[#allocation6 + $0x4] sm:$0xf]
    %v93 = vld [vmem:[#allocation6 + $0x8] sm:$0xf]
    %v94 = vld [vmem:[#allocation6 + $0xc] sm:$0xf]
    %v95 = vld [vmem:[#allocation6 + $0x10] sm:$0xf]
    %v96 = vld [vmem:[#allocation6 + $0x14] sm:$0xf]
    %v97 = vld [vmem:[#allocation6 + $0x18] sm:$0xf]
    %v98 = vld [vmem:[#allocation6 + $0x1c] sm:$0xf]
    %v99 = vld [vmem:[#allocation6 + $0x20] sm:$0xf]
    %v100 = vld [vmem:[#allocation6 + $0x24] sm:$0xf]
    %v101 = vld [vmem:[#allocation6 + $0x28] sm:$0xf]
    %v102 = vld [vmem:[#allocation6 + $0x2c] sm:$0xf]
    %v103 = vld [vmem:[#allocation6 + $0x30] sm:$0xf]
    %v104 = vld [vmem:[#allocation6 + $0x34] sm:$0xf]
    %v105 = vld [vmem:[#allocation6 + $0x38] sm:$0xf]
    %v106 = vld [vmem:[#allocation6 + $0x3c] sm:$0xf]
    %v107 = vld [vmem:[#allocation6 + $0x40] sm:$0xf]
    %v108 = vld [vmem:[#allocation6 + $0x44] sm:$0xf]
    %v109 = vld [vmem:[#allocation6 + $0x48] sm:$0xf]
    %v110 = vld [vmem:[#allocation6 + $0x4c] sm:$0xf]
    %v111 = vld [vmem:[#allocation6 + $0x50] sm:$0xf]
    %v112 = vld [vmem:[#allocation6 + $0x54] sm:$0xf]
    %v113 = vld [vmem:[#allocation6 + $0x58] sm:$0xf]
    %v114 = vld [vmem:[#allocation6 + $0x5c] sm:$0xf]
    %v115 = vld [vmem:[#allocation6 + $0x60] sm:$0xf]
    %v116 = vld [vmem:[#allocation6 + $0x64] sm:$0xf]
    %v117 = vld [vmem:[#allocation6 + $0x68] sm:$0xf]
    %v118 = vld [vmem:[#allocation6 + $0x6c] sm:$0xf]
    %v119 = vld [vmem:[#allocation6 + $0x70] sm:$0xf]
    %v120 = vld [vmem:[#allocation6 + $0x74] sm:$0xf]
    %v121 = vld [vmem:[#allocation6 + $0x78] sm:$0xf]
    %v122 = vld [vmem:[#allocation6 + $0x7c] sm:$0xf]
    %v123 = vld [vmem:[#allocation6 + $0x80] sm:$0xf]
    %v124 = vld [vmem:[#allocation6 + $0x84] sm:$0xf]
    %v125 = vld [vmem:[#allocation6 + $0x88] sm:$0xf]
    %v126 = vld [vmem:[#allocation6 + $0x8c] sm:$0xf]
    %v127 = vld [vmem:[#allocation6 + $0x90] sm:$0xf]
    %v128 = vld [vmem:[#allocation6 + $0x94] sm:$0xf]
    %v129 = vld [vmem:[#allocation6 + $0x98] sm:$0xf]
    %v130 = vld [vmem:[#allocation6 + $0x9c] sm:$0xf]
    %v131 = vld [vmem:[#allocation6 + $0xa0] sm:$0xf]
    %v132 = vld [vmem:[#allocation6 + $0xa4] sm:$0xf]
    %v133 = vld [vmem:[#allocation6 + $0xa8] sm:$0xf]
    %v134 = vld [vmem:[#allocation6 + $0xac] sm:$0xf]
    %v135 = vld [vmem:[#allocation6 + $0xb0] sm:$0xf]
    %v136 = vld [vmem:[#allocation6 + $0xb4] sm:$0xf]
    %v137 = vld [vmem:[#allocation6 + $0xb8] sm:$0xf]
    %v138 = vld [vmem:[#allocation6 + $0xbc] sm:$0xf]
    %v139 = vld [vmem:[#allocation6 + $0xc0] sm:$0xf]
    %v140 = vld [vmem:[#allocation6 + $0xc4] sm:$0xf]
    %v141 = vld [vmem:[#allocation6 + $0xc8] sm:$0xf]
    %v142 = vld [vmem:[#allocation6 + $0xcc] sm:$0xf]
    %v143 = vld [vmem:[#allocation6 + $0xd0] sm:$0xf]
    %v144 = vld [vmem:[#allocation6 + $0xd4] sm:$0xf]
    %v145 = vld [vmem:[#allocation6 + $0xd8] sm:$0xf]
    %v146 = vld [vmem:[#allocation6 + $0xdc] sm:$0xf]
    %v147 = vld [vmem:[#allocation6 + $0xe0] sm:$0xf]
    %v148 = vld [vmem:[#allocation6 + $0xe4] sm:$0xf]
    %v149 = vld [vmem:[#allocation6 + $0xe8] sm:$0xf]
    %v150 = vld [vmem:[#allocation6 + $0xec] sm:$0xf]
    %v151 = vld [vmem:[#allocation6 + $0xf0] sm:$0xf]
    %v152 = vld [vmem:[#allocation6 + $0xf4] sm:$0xf]
    %v153 = vld [vmem:[#allocation6 + $0xf8] sm:$0xf]
    %v154 = vld [vmem:[#allocation6 + $0xfc] sm:$0xf]
    %v155 = vld [vmem:[#allocation6 + $0x100] sm:$0xf]
    %v156 = vld [vmem:[#allocation6 + $0x104] sm:$0xf]
    %v157 = vld [vmem:[#allocation6 + $0x108] sm:$0xf]
    %v158 = vld [vmem:[#allocation6 + $0x10c] sm:$0xf]
    %v159 = vld [vmem:[#allocation6 + $0x110] sm:$0xf]
    %v160 = vld [vmem:[#allocation6 + $0x114] sm:$0xf]
    %v161 = vld [vmem:[#allocation6 + $0x118] sm:$0xf]
    %v162 = vld [vmem:[#allocation6 + $0x11c] sm:$0xf]
    %v163 = vld [vmem:[#allocation6 + $0x120] sm:$0xf]
    %v164 = vld [vmem:[#allocation6 + $0x124] sm:$0xf]
    %v165 = vld [vmem:[#allocation6 + $0x128] sm:$0xf]
    %v166 = vld [vmem:[#allocation6 + $0x12c] sm:$0xf]
    %v167 = vld [vmem:[#allocation6 + $0x130] sm:$0xf]
    %v168 = vld [vmem:[#allocation6 + $0x134] sm:$0xf]
    %v169 = vld [vmem:[#allocation6 + $0x138] sm:$0xf]
    %v170 = vld [vmem:[#allocation6 + $0x13c] sm:$0xf]
    %v171 = vld [vmem:[#allocation6 + $0x140] sm:$0xf]
    %v172 = vld [vmem:[#allocation6 + $0x144] sm:$0xf]
    %v173 = vld [vmem:[#allocation6 + $0x148] sm:$0xf]
    %v174 = vld [vmem:[#allocation6 + $0x14c] sm:$0xf]
    %v175 = vld [vmem:[#allocation6 + $0x150] sm:$0xf]
    %v176 = vld [vmem:[#allocation6 + $0x154] sm:$0xf]
    %v177 = vld [vmem:[#allocation6 + $0x158] sm:$0xf]
    %v178 = vld [vmem:[#allocation6 + $0x15c] sm:$0xf]
    %v179 = vld [vmem:[#allocation6 + $0x160] sm:$0xf]
    %v180 = vld [vmem:[#allocation6 + $0x164] sm:$0xf]
    %v181 = vld [vmem:[#allocation6 + $0x168] sm:$0xf]
    %v182 = vld [vmem:[#allocation6 + $0x16c] sm:$0xf]
    %v183 = vld [vmem:[#allocation6 + $0x170] sm:$0xf]
    %v184 = vld [vmem:[#allocation6 + $0x174] sm:$0xf]
    %v185 = vld [vmem:[#allocation6 + $0x178] sm:$0xf]
    %v186 = vld [vmem:[#allocation6 + $0x17c] sm:$0xf]
    %v187 = vld [vmem:[#allocation6 + $0x180] sm:$0xf]
    %v188 = vld [vmem:[#allocation6 + $0x184] sm:$0xf]
    %v189 = vld [vmem:[#allocation6 + $0x188] sm:$0xf]
    %v190 = vld [vmem:[#allocation6 + $0x18c] sm:$0xf]
    %v191 = vld [vmem:[#allocation6 + $0x190] sm:$0xf]
    %v192 = vld [vmem:[#allocation6 + $0x194] sm:$0xf]
    %v193 = vld [vmem:[#allocation6 + $0x198] sm:$0xf]
    %v194 = vld [vmem:[#allocation6 + $0x19c] sm:$0xf]
    %v195 = vld [vmem:[#allocation6 + $0x1a0] sm:$0xf]
    %v196 = vld [vmem:[#allocation6 + $0x1a4] sm:$0xf]
    %v197 = vld [vmem:[#allocation6 + $0x1a8] sm:$0xf]
    %v198 = vld [vmem:[#allocation6 + $0x1ac] sm:$0xf]
    %v199 = vld [vmem:[#allocation6 + $0x1b0] sm:$0xf]
    %v200 = vld [vmem:[#allocation6 + $0x1b4] sm:$0xf]
    %v201 = vld [vmem:[#allocation6 + $0x1b8] sm:$0xf]
    %v202 = vld [vmem:[#allocation6 + $0x1bc] sm:$0xf]
    %v203 = vld [vmem:[#allocation6 + $0x1c0] sm:$0xf]
    %v204 = vld [vmem:[#allocation6 + $0x1c4] sm:$0xf]
    %v205 = vld [vmem:[#allocation6 + $0x1c8] sm:$0xf]
    %v206 = vld [vmem:[#allocation6 + $0x1cc] sm:$0xf]
    %v207 = vld [vmem:[#allocation6 + $0x1d0] sm:$0xf]
    %v208 = vld [vmem:[#allocation6 + $0x1d4] sm:$0xf]
    %v209 = vld [vmem:[#allocation6 + $0x1d8] sm:$0xf]
    %v210 = vld [vmem:[#allocation6 + $0x1dc] sm:$0xf]
    %v211 = vld [vmem:[#allocation6 + $0x1e0] sm:$0xf]
    %v212 = vld [vmem:[#allocation6 + $0x1e4] sm:$0xf]
    %v213 = vld [vmem:[#allocation6 + $0x1e8] sm:$0xf]
    %v214 = vld [vmem:[#allocation6 + $0x1ec] sm:$0xf]
    %v215 = vld [vmem:[#allocation6 + $0x1f0] sm:$0xf]
    %v216 = vld [vmem:[#allocation6 + $0x1f4] sm:$0xf]
    %v217 = vld [vmem:[#allocation6 + $0x1f8] sm:$0xf]
    %v218 = vld [vmem:[#allocation6 + $0x1fc] sm:$0xf]
    %v223 = vunpack.c.l.b16 %v87
    %v224 = vunpack.c.h.b16 %v87
    %v225 = vunpack.c.l.b16 %v88
    %v226 = vunpack.c.h.b16 %v88
    %v227 = vunpack.c.l.b16 %v89
    %v228 = vunpack.c.h.b16 %v89
    %v229 = vunpack.c.l.b16 %v90
    %v230 = vunpack.c.h.b16 %v90
    %v231 = vpack.c.b16 %v223, %v223
    %v232 = vpack.c.b16 %v224, %v224
    %v233 = vpack.c.b16 %v225, %v225
    %v234 = vpack.c.b16 %v226, %v226
    %v235 = vpack.c.b16 %v227, %v227
    %v236 = vpack.c.b16 %v228, %v228
    %v237 = vpack.c.b16 %v229, %v229
    %v238 = vpack.c.b16 %v230, %v230
    %v375 = vunpack.c.l.b16 %v91
    %v376 = vunpack.c.l.b16 %v92
    %v377 = vunpack.c.l.b16 %v93
    %v378 = vunpack.c.l.b16 %v94
    %v379 = vunpack.c.l.b16 %v95
    %v380 = vunpack.c.l.b16 %v96
    %v381 = vunpack.c.l.b16 %v97
    %v382 = vunpack.c.l.b16 %v98
    %v383 = vunpack.c.l.b16 %v99
    %v384 = vunpack.c.l.b16 %v100
    %v385 = vunpack.c.l.b16 %v101
    %v386 = vunpack.c.l.b16 %v102
    %v387 = vunpack.c.l.b16 %v103
    %v388 = vunpack.c.l.b16 %v104
    %v389 = vunpack.c.l.b16 %v105
    %v390 = vunpack.c.l.b16 %v106
    %v391 = vunpack.c.l.b16 %v107
    %v392 = vunpack.c.l.b16 %v108
    %v393 = vunpack.c.l.b16 %v109
    %v394 = vunpack.c.l.b16 %v110
    %v395 = vunpack.c.l.b16 %v111
    %v396 = vunpack.c.l.b16 %v112
    %v397 = vunpack.c.l.b16 %v113
    %v398 = vunpack.c.l.b16 %v114
    %v399 = vunpack.c.l.b16 %v115
    %v400 = vunpack.c.l.b16 %v116
    %v401 = vunpack.c.l.b16 %v117
    %v402 = vunpack.c.l.b16 %v118
    %v403 = vunpack.c.l.b16 %v119
    %v404 = vunpack.c.l.b16 %v120
    %v405 = vunpack.c.l.b16 %v121
    %v406 = vunpack.c.l.b16 %v122
    %v407 = vunpack.c.l.b16 %v123
    %v408 = vunpack.c.l.b16 %v124
    %v409 = vunpack.c.l.b16 %v125
    %v410 = vunpack.c.l.b16 %v126
    %v411 = vunpack.c.l.b16 %v127
    %v412 = vunpack.c.l.b16 %v128
    %v413 = vunpack.c.l.b16 %v129
    %v414 = vunpack.c.l.b16 %v130
    %v415 = vunpack.c.l.b16 %v131
    %v416 = vunpack.c.l.b16 %v132
    %v417 = vunpack.c.l.b16 %v133
    %v418 = vunpack.c.l.b16 %v134
    %v419 = vunpack.c.l.b16 %v135
    %v420 = vunpack.c.l.b16 %v136
    %v421 = vunpack.c.l.b16 %v137
    %v422 = vunpack.c.l.b16 %v138
    %v423 = vunpack.c.l.b16 %v139
    %v424 = vunpack.c.l.b16 %v140
    %v425 = vunpack.c.l.b16 %v141
    %v426 = vunpack.c.l.b16 %v142
    %v427 = vunpack.c.l.b16 %v143
    %v428 = vunpack.c.l.b16 %v144
    %v429 = vunpack.c.l.b16 %v145
    %v430 = vunpack.c.l.b16 %v146
    %v431 = vunpack.c.l.b16 %v147
    %v432 = vunpack.c.l.b16 %v148
    %v433 = vunpack.c.l.b16 %v149
    %v434 = vunpack.c.l.b16 %v150
    %v435 = vunpack.c.l.b16 %v151
    %v436 = vunpack.c.l.b16 %v152
    %v437 = vunpack.c.l.b16 %v153
    %v438 = vunpack.c.l.b16 %v154
    %v439 = vunpack.c.l.b16 %v155
    %v440 = vunpack.c.l.b16 %v156
    %v441 = vunpack.c.l.b16 %v157
    %v442 = vunpack.c.l.b16 %v158
    %v443 = vunpack.c.l.b16 %v159
    %v444 = vunpack.c.l.b16 %v160
    %v445 = vunpack.c.l.b16 %v161
    %v446 = vunpack.c.l.b16 %v162
    %v447 = vunpack.c.l.b16 %v163
    %v448 = vunpack.c.l.b16 %v164
    %v449 = vunpack.c.l.b16 %v165
    %v450 = vunpack.c.l.b16 %v166
    %v451 = vunpack.c.l.b16 %v167
    %v452 = vunpack.c.l.b16 %v168
    %v453 = vunpack.c.l.b16 %v169
    %v454 = vunpack.c.l.b16 %v170
    %v455 = vunpack.c.l.b16 %v171
    %v456 = vunpack.c.l.b16 %v172
    %v457 = vunpack.c.l.b16 %v173
    %v458 = vunpack.c.l.b16 %v174
    %v459 = vunpack.c.l.b16 %v175
    %v460 = vunpack.c.l.b16 %v176
    %v461 = vunpack.c.l.b16 %v177
    %v462 = vunpack.c.l.b16 %v178
    %v463 = vunpack.c.l.b16 %v179
    %v464 = vunpack.c.l.b16 %v180
    %v465 = vunpack.c.l.b16 %v181
    %v466 = vunpack.c.l.b16 %v182
    %v467 = vunpack.c.l.b16 %v183
    %v468 = vunpack.c.l.b16 %v184
    %v469 = vunpack.c.l.b16 %v185
    %v470 = vunpack.c.l.b16 %v186
    %v471 = vunpack.c.l.b16 %v187
    %v472 = vunpack.c.l.b16 %v188
    %v473 = vunpack.c.l.b16 %v189
    %v474 = vunpack.c.l.b16 %v190
    %v475 = vunpack.c.l.b16 %v191
    %v476 = vunpack.c.l.b16 %v192
    %v477 = vunpack.c.l.b16 %v193
    %v478 = vunpack.c.l.b16 %v194
    %v479 = vunpack.c.l.b16 %v195
    %v480 = vunpack.c.l.b16 %v196
    %v481 = vunpack.c.l.b16 %v197
    %v482 = vunpack.c.l.b16 %v198
    %v483 = vunpack.c.l.b16 %v199
    %v484 = vunpack.c.l.b16 %v200
    %v485 = vunpack.c.l.b16 %v201
    %v486 = vunpack.c.l.b16 %v202
    %v487 = vunpack.c.l.b16 %v203
    %v488 = vunpack.c.l.b16 %v204
    %v489 = vunpack.c.l.b16 %v205
    %v490 = vunpack.c.l.b16 %v206
    %v491 = vunpack.c.l.b16 %v207
    %v492 = vunpack.c.l.b16 %v208
    %v493 = vunpack.c.l.b16 %v209
    %v494 = vunpack.c.l.b16 %v210
    %v495 = vunpack.c.l.b16 %v211
    %v496 = vunpack.c.l.b16 %v212
    %v497 = vunpack.c.l.b16 %v213
    %v498 = vunpack.c.l.b16 %v214
    %v499 = vunpack.c.l.b16 %v215
    %v500 = vunpack.c.l.b16 %v216
    %v501 = vunpack.c.l.b16 %v217
    %v502 = vunpack.c.l.b16 %v218
    %v503 = vpack.c.b16 %v376, %v375
    %v504 = vpack.c.b16 %v378, %v377
    %v505 = vpack.c.b16 %v380, %v379
    %v506 = vpack.c.b16 %v382, %v381
    %v507 = vpack.c.b16 %v384, %v383
    %v508 = vpack.c.b16 %v386, %v385
    %v509 = vpack.c.b16 %v388, %v387
    %v510 = vpack.c.b16 %v390, %v389
    %v511 = vpack.c.b16 %v392, %v391
    %v512 = vpack.c.b16 %v394, %v393
    %v513 = vpack.c.b16 %v396, %v395
    %v514 = vpack.c.b16 %v398, %v397
    %v515 = vpack.c.b16 %v400, %v399
    %v516 = vpack.c.b16 %v402, %v401
    %v517 = vpack.c.b16 %v404, %v403
    %v518 = vpack.c.b16 %v406, %v405
    %v519 = vpack.c.b16 %v408, %v407
    %v520 = vpack.c.b16 %v410, %v409
    %v521 = vpack.c.b16 %v412, %v411
    %v522 = vpack.c.b16 %v414, %v413
    %v523 = vpack.c.b16 %v416, %v415
    %v524 = vpack.c.b16 %v418, %v417
    %v525 = vpack.c.b16 %v420, %v419
    %v526 = vpack.c.b16 %v422, %v421
    %v527 = vpack.c.b16 %v424, %v423
    %v528 = vpack.c.b16 %v426, %v425
    %v529 = vpack.c.b16 %v428, %v427
    %v530 = vpack.c.b16 %v430, %v429
    %v531 = vpack.c.b16 %v432, %v431
    %v532 = vpack.c.b16 %v434, %v433
    %v533 = vpack.c.b16 %v436, %v435
    %v534 = vpack.c.b16 %v438, %v437
    %v535 = vpack.c.b16 %v440, %v439
    %v536 = vpack.c.b16 %v442, %v441
    %v537 = vpack.c.b16 %v444, %v443
    %v538 = vpack.c.b16 %v446, %v445
    %v539 = vpack.c.b16 %v448, %v447
    %v540 = vpack.c.b16 %v450, %v449
    %v541 = vpack.c.b16 %v452, %v451
    %v542 = vpack.c.b16 %v454, %v453
    %v543 = vpack.c.b16 %v456, %v455
    %v544 = vpack.c.b16 %v458, %v457
    %v545 = vpack.c.b16 %v460, %v459
    %v546 = vpack.c.b16 %v462, %v461
    %v547 = vpack.c.b16 %v464, %v463
    %v548 = vpack.c.b16 %v466, %v465
    %v549 = vpack.c.b16 %v468, %v467
    %v550 = vpack.c.b16 %v470, %v469
    %v551 = vpack.c.b16 %v472, %v471
    %v552 = vpack.c.b16 %v474, %v473
    %v553 = vpack.c.b16 %v476, %v475
    %v554 = vpack.c.b16 %v478, %v477
    %v555 = vpack.c.b16 %v480, %v479
    %v556 = vpack.c.b16 %v482, %v481
    %v557 = vpack.c.b16 %v484, %v483
    %v558 = vpack.c.b16 %v486, %v485
    %v559 = vpack.c.b16 %v488, %v487
    %v560 = vpack.c.b16 %v490, %v489
    %v561 = vpack.c.b16 %v492, %v491
    %v562 = vpack.c.b16 %v494, %v493
    %v563 = vpack.c.b16 %v496, %v495
    %v564 = vpack.c.b16 %v498, %v497
    %v565 = vpack.c.b16 %v500, %v499
    %v566 = vpack.c.b16 %v502, %v501
    %631 = vmatprep.subr.bf16.mxu0 0
    %632 = vmatpush1.bf16.msra.mxu0 %v510
    %633 = vmatprep.subr.bf16.mxu0 0
    %634 = vmatpush1.bf16.msra.mxu0 %v509
    %635 = vmatprep.subr.bf16.mxu0 0
    %636 = vmatpush1.bf16.msra.mxu0 %v508
    %637 = vmatprep.subr.bf16.mxu0 0
    %638 = vmatpush1.bf16.msra.mxu0 %v507
    %639 = vmatprep.subr.bf16.mxu0 0
    %640 = vmatpush1.bf16.msra.mxu0 %v506
    %641 = vmatprep.subr.bf16.mxu0 0
    %642 = vmatpush1.bf16.msra.mxu0 %v505
    %643 = vmatprep.subr.bf16.mxu0 0
    %644 = vmatpush1.bf16.msra.mxu0 %v504
    %645 = vmatprep.subr.bf16.mxu0 0
    %646 = vmatpush1.bf16.msra.mxu0 %v503
    %647 = vmatprep.subr.bf16.mxu0 0
    %648 = vmatpush2.bf16.msra.mxu0 %v518
    %649 = vmatprep.subr.bf16.mxu0 0
    %650 = vmatpush2.bf16.msra.mxu0 %v517
    %651 = vmatprep.subr.bf16.mxu0 0
    %652 = vmatpush2.bf16.msra.mxu0 %v516
    %653 = vmatprep.subr.bf16.mxu0 0
    %654 = vmatpush2.bf16.msra.mxu0 %v515
    %655 = vmatprep.subr.bf16.mxu0 0
    %656 = vmatpush2.bf16.msra.mxu0 %v514
    %657 = vmatprep.subr.bf16.mxu0 0
    %658 = vmatpush2.bf16.msra.mxu0 %v513
    %659 = vmatprep.subr.bf16.mxu0 0
    %660 = vmatpush2.bf16.msra.mxu0 %v512
    %661 = vmatprep.subr.bf16.mxu0 0
    %662 = vmatpush2.bf16.msra.mxu0 %v511
    %663 = vmatprep.mubr.bf16.mxu0 %v232
    %664 = vmatmul.mubr.bf16.gmra.mxu0 %v231
    %v665 = vpop.f32.mrf.mxu0
    %v666 = vadd.f32 0.0, %v665
    %v667 = vpop.f32.mrf.mxu0
    %v668 = vpop.f32.mrf.mxu0
    %v669 = vpop.f32.mrf.mxu0
    %670 = vdwg.mxu0
    %671 = vmatprep.subr.bf16.mxu0 0
    %672 = vmatpush1.bf16.msra.mxu0 %v526
    %673 = vmatprep.subr.bf16.mxu0 0
    %674 = vmatpush1.bf16.msra.mxu0 %v525
    %675 = vmatprep.subr.bf16.mxu0 0
    %676 = vmatpush1.bf16.msra.mxu0 %v524
    %677 = vmatprep.subr.bf16.mxu0 0
    %678 = vmatpush1.bf16.msra.mxu0 %v523
    %679 = vmatprep.subr.bf16.mxu0 0
    %680 = vmatpush1.bf16.msra.mxu0 %v522
    %681 = vmatprep.subr.bf16.mxu0 0
    %682 = vmatpush1.bf16.msra.mxu0 %v521
    %683 = vmatprep.subr.bf16.mxu0 0
    %684 = vmatpush1.bf16.msra.mxu0 %v520
    %685 = vmatprep.subr.bf16.mxu0 0
    %686 = vmatpush1.bf16.msra.mxu0 %v519
    %687 = vmatprep.subr.bf16.mxu0 0
    %688 = vmatpush2.bf16.msra.mxu0 %v534
    %689 = vmatprep.subr.bf16.mxu0 0
    %690 = vmatpush2.bf16.msra.mxu0 %v533
    %691 = vmatprep.subr.bf16.mxu0 0
    %692 = vmatpush2.bf16.msra.mxu0 %v532
    %693 = vmatprep.subr.bf16.mxu0 0
    %694 = vmatpush2.bf16.msra.mxu0 %v531
    %695 = vmatprep.subr.bf16.mxu0 0
    %696 = vmatpush2.bf16.msra.mxu0 %v530
    %697 = vmatprep.subr.bf16.mxu0 0
    %698 = vmatpush2.bf16.msra.mxu0 %v529
    %699 = vmatprep.subr.bf16.mxu0 0
    %700 = vmatpush2.bf16.msra.mxu0 %v528
    %701 = vmatprep.subr.bf16.mxu0 0
    %702 = vmatpush2.bf16.msra.mxu0 %v527
    %703 = vmatprep.mubr.bf16.mxu0 %v234
    %704 = vmatmul.mubr.bf16.gmra.mxu0 %v233
    %v705 = vpop.f32.mrf.mxu0
    %v706 = vadd.f32 %v666, %v705
    %v707 = vpop.f32.mrf.mxu0
    %v708 = vpop.f32.mrf.mxu0
    %v709 = vpop.f32.mrf.mxu0
    %710 = vdwg.mxu0
    %711 = vmatprep.subr.bf16.mxu0 0
    %712 = vmatpush1.bf16.msra.mxu0 %v542
    %713 = vmatprep.subr.bf16.mxu0 0
    %714 = vmatpush1.bf16.msra.mxu0 %v541
    %715 = vmatprep.subr.bf16.mxu0 0
    %716 = vmatpush1.bf16.msra.mxu0 %v540
    %717 = vmatprep.subr.bf16.mxu0 0
    %718 = vmatpush1.bf16.msra.mxu0 %v539
    %719 = vmatprep.subr.bf16.mxu0 0
    %720 = vmatpush1.bf16.msra.mxu0 %v538
    %721 = vmatprep.subr.bf16.mxu0 0
    %722 = vmatpush1.bf16.msra.mxu0 %v537
    %723 = vmatprep.subr.bf16.mxu0 0
    %724 = vmatpush1.bf16.msra.mxu0 %v536
    %725 = vmatprep.subr.bf16.mxu0 0
    %726 = vmatpush1.bf16.msra.mxu0 %v535
    %727 = vmatprep.subr.bf16.mxu0 0
    %728 = vmatpush2.bf16.msra.mxu0 %v550
    %729 = vmatprep.subr.bf16.mxu0 0
    %730 = vmatpush2.bf16.msra.mxu0 %v549
    %731 = vmatprep.subr.bf16.mxu0 0
    %732 = vmatpush2.bf16.msra.mxu0 %v548
    %733 = vmatprep.subr.bf16.mxu0 0
    %734 = vmatpush2.bf16.msra.mxu0 %v547
    %735 = vmatprep.subr.bf16.mxu0 0
    %736 = vmatpush2.bf16.msra.mxu0 %v546
    %737 = vmatprep.subr.bf16.mxu0 0
    %738 = vmatpush2.bf16.msra.mxu0 %v545
    %739 = vmatprep.subr.bf16.mxu0 0
    %740 = vmatpush2.bf16.msra.mxu0 %v544
    %741 = vmatprep.subr.bf16.mxu0 0
    %742 = vmatpush2.bf16.msra.mxu0 %v543
    %743 = vmatprep.mubr.bf16.mxu0 %v236
    %744 = vmatmul.mubr.bf16.gmra.mxu0 %v235
    %v745 = vpop.f32.mrf.mxu0
    %v746 = vadd.f32 %v706, %v745
    %v747 = vpop.f32.mrf.mxu0
    %v748 = vpop.f32.mrf.mxu0
    %v749 = vpop.f32.mrf.mxu0
    %750 = vdwg.mxu0
    %751 = vmatprep.subr.bf16.mxu0 0
    %752 = vmatpush1.bf16.msra.mxu0 %v558
    %753 = vmatprep.subr.bf16.mxu0 0
    %754 = vmatpush1.bf16.msra.mxu0 %v557
    %755 = vmatprep.subr.bf16.mxu0 0
    %756 = vmatpush1.bf16.msra.mxu0 %v556
    %757 = vmatprep.subr.bf16.mxu0 0
    %758 = vmatpush1.bf16.msra.mxu0 %v555
    %759 = vmatprep.subr.bf16.mxu0 0
    %760 = vmatpush1.bf16.msra.mxu0 %v554
    %761 = vmatprep.subr.bf16.mxu0 0
    %762 = vmatpush1.bf16.msra.mxu0 %v553
    %763 = vmatprep.subr.bf16.mxu0 0
    %764 = vmatpush1.bf16.msra.mxu0 %v552
    %765 = vmatprep.subr.bf16.mxu0 0
    %766 = vmatpush1.bf16.msra.mxu0 %v551
    %767 = vmatprep.subr.bf16.mxu0 0
    %768 = vmatpush2.bf16.msra.mxu0 %v566
    %769 = vmatprep.subr.bf16.mxu0 0
    %770 = vmatpush2.bf16.msra.mxu0 %v565
    %771 = vmatprep.subr.bf16.mxu0 0
    %772 = vmatpush2.bf16.msra.mxu0 %v564
    %773 = vmatprep.subr.bf16.mxu0 0
    %774 = vmatpush2.bf16.msra.mxu0 %v563
    %775 = vmatprep.subr.bf16.mxu0 0
    %776 = vmatpush2.bf16.msra.mxu0 %v562
    %777 = vmatprep.subr.bf16.mxu0 0
    %778 = vmatpush2.bf16.msra.mxu0 %v561
    %779 = vmatprep.subr.bf16.mxu0 0
    %780 = vmatpush2.bf16.msra.mxu0 %v560
    %781 = vmatprep.subr.bf16.mxu0 0
    %782 = vmatpush2.bf16.msra.mxu0 %v559
    %783 = vmatprep.mubr.bf16.mxu0 %v238
    %784 = vmatmul.mubr.bf16.gmra.mxu0 %v237
    %v785 = vpop.f32.mrf.mxu0
    %v786 = vadd.f32 %v746, %v785
    %v787 = vpop.f32.mrf.mxu0
    %v788 = vpop.f32.mrf.mxu0
    %v789 = vpop.f32.mrf.mxu0
    %790 = vdwg.mxu0
    %v791 = vadd.f32 %v86, %v786
    %792 = vst [vmem:[#allocation2] sm:$0xff] %v791
    // Predicated region
    $region50: #{tpu_custom_call.1} parent=1 // pred_check
      %p793 = pneg %p81
    $region51: #{tpu_custom_call.1} parent=1 // pred_check_branch
      %795 = sbr.rel (%p793) target = $region53
    $region52: #{tpu_custom_call.1} parent=1 // pred_region
      %v796 = vld [vmem:[#allocation2] sm:$0xff]
      %v797 = vld [vmem:[%s2] sm:$0x1]
      %v799 = vlaneseq
      %v800 = vshrl.u32 %v799, 7
      %v801 = vsub.s32 0, %v800
      %v802 = vrot.slane %v797, %v801
      %v804 = vadd.f32 %v796, %v802
      %v805 = vmax.f32 %v804, 0.0
      %v806 = vpack.c.bf16 %v805, %v805
      %v807 = vld [vmem:[#allocation8] sm:$0xf]
      %v808 = vld [vmem:[#allocation8 + $0x4] sm:$0xf]
      %v809 = vld [vmem:[#allocation8 + $0x8] sm:$0xf]
      %v810 = vld [vmem:[#allocation8 + $0xc] sm:$0xf]
      %v811 = vld [vmem:[#allocation8 + $0x10] sm:$0xf]
      %v812 = vld [vmem:[#allocation8 + $0x14] sm:$0xf]
      %v813 = vld [vmem:[#allocation8 + $0x18] sm:$0xf]
      %v814 = vld [vmem:[#allocation8 + $0x1c] sm:$0xf]
      %v815 = vld [vmem:[#allocation8 + $0x20] sm:$0xf]
      %v816 = vld [vmem:[#allocation8 + $0x24] sm:$0xf]
      %v817 = vld [vmem:[#allocation8 + $0x28] sm:$0xf]
      %v818 = vld [vmem:[#allocation8 + $0x2c] sm:$0xf]
      %v819 = vld [vmem:[#allocation8 + $0x30] sm:$0xf]
      %v820 = vld [vmem:[#allocation8 + $0x34] sm:$0xf]
      %v821 = vld [vmem:[#allocation8 + $0x38] sm:$0xf]
      %v822 = vld [vmem:[#allocation8 + $0x3c] sm:$0xf]
      %v823 = vld [vmem:[%s4] sm:$0x1]
      %v825 = vlaneseq
      %v826 = vshrl.u32 %v825, 7
      %v827 = vsub.s32 0, %v826
      %v828 = vrot.slane %v823, %v827
      %v846 = vunpack.c.l.b16 %v807
      %v847 = vunpack.c.l.b16 %v808
      %v848 = vunpack.c.l.b16 %v809
      %v849 = vunpack.c.l.b16 %v810
      %v850 = vunpack.c.l.b16 %v811
      %v851 = vunpack.c.l.b16 %v812
      %v852 = vunpack.c.l.b16 %v813
      %v853 = vunpack.c.l.b16 %v814
      %v854 = vunpack.c.l.b16 %v815
      %v855 = vunpack.c.l.b16 %v816
      %v856 = vunpack.c.l.b16 %v817
      %v857 = vunpack.c.l.b16 %v818
      %v858 = vunpack.c.l.b16 %v819
      %v859 = vunpack.c.l.b16 %v820
      %v860 = vunpack.c.l.b16 %v821
      %v861 = vunpack.c.l.b16 %v822
      %v862 = vpack.c.b16 %v847, %v846
      %v863 = vpack.c.b16 %v849, %v848
      %v864 = vpack.c.b16 %v851, %v850
      %v865 = vpack.c.b16 %v853, %v852
      %v866 = vpack.c.b16 %v855, %v854
      %v867 = vpack.c.b16 %v857, %v856
      %v868 = vpack.c.b16 %v859, %v858
      %v869 = vpack.c.b16 %v861, %v860
      %878 = vmatprep.subr.bf16.mxu0 0
      %879 = vmatpush1.bf16.msra.mxu0 %v869
      %880 = vmatprep.subr.bf16.mxu0 0
      %881 = vmatpush1.bf16.msra.mxu0 %v868
      %882 = vmatprep.subr.bf16.mxu0 0
      %883 = vmatpush1.bf16.msra.mxu0 %v867
      %884 = vmatprep.subr.bf16.mxu0 0
      %885 = vmatpush1.bf16.msra.mxu0 %v866
      %886 = vmatprep.subr.bf16.mxu0 0
      %887 = vmatpush1.bf16.msra.mxu0 %v865
      %888 = vmatprep.subr.bf16.mxu0 0
      %889 = vmatpush1.bf16.msra.mxu0 %v864
      %890 = vmatprep.subr.bf16.mxu0 0
      %891 = vmatpush1.bf16.msra.mxu0 %v863
      %892 = vmatprep.subr.bf16.mxu0 0
      %893 = vmatpush1.bf16.msra.mxu0 %v862
      %894 = vmatprep.subr.bf16.mxu0 0
      %895 = vmatpush2.bf16.msra.mxu0 0
      %896 = vmatprep.subr.bf16.mxu0 0
      %897 = vmatpush2.bf16.msra.mxu0 0
      %898 = vmatprep.subr.bf16.mxu0 0
      %899 = vmatpush2.bf16.msra.mxu0 0
      %900 = vmatprep.subr.bf16.mxu0 0
      %901 = vmatpush2.bf16.msra.mxu0 0
      %902 = vmatprep.subr.bf16.mxu0 0
      %903 = vmatpush2.bf16.msra.mxu0 0
      %904 = vmatprep.subr.bf16.mxu0 0
      %905 = vmatpush2.bf16.msra.mxu0 0
      %906 = vmatprep.subr.bf16.mxu0 0
      %907 = vmatpush2.bf16.msra.mxu0 0
      %908 = vmatprep.subr.bf16.mxu0 0
      %909 = vmatpush2.bf16.msra.mxu0 0
      %910 = vmatprep.mubr.bf16.mxu0 0
      %911 = vmatmul.mubr.bf16.gmra.mxu0 %v806
      %v912 = vpop.f32.mrf.mxu0
      %v913 = vadd.f32 %v828, %v912
      %v914 = vpop.f32.mrf.mxu0
      %v915 = vpop.f32.mrf.mxu0
      %v916 = vpop.f32.mrf.mxu0
      %917 = vdwg.mxu0
      %v918 = vmax.f32 %v913, 0.0
      %v919 = vpack.c.bf16 %v918, %v918
      %v920 = vld [vmem:[#allocation9] sm:$0xf]
      %v921 = vld [vmem:[#allocation9 + $0x4] sm:$0xf]
      %v922 = vld [vmem:[#allocation9 + $0x8] sm:$0xf]
      %v923 = vld [vmem:[#allocation9 + $0xc] sm:$0xf]
      %v924 = vld [vmem:[#allocation9 + $0x10] sm:$0xf]
      %v925 = vld [vmem:[#allocation9 + $0x14] sm:$0xf]
      %v926 = vld [vmem:[#allocation9 + $0x18] sm:$0xf]
      %v927 = vld [vmem:[#allocation9 + $0x1c] sm:$0xf]
      %v928 = vld [vmem:[#allocation9 + $0x20] sm:$0xf]
      %v929 = vld [vmem:[#allocation9 + $0x24] sm:$0xf]
      %v930 = vld [vmem:[#allocation9 + $0x28] sm:$0xf]
      %v931 = vld [vmem:[#allocation9 + $0x2c] sm:$0xf]
      %v932 = vld [vmem:[#allocation9 + $0x30] sm:$0xf]
      %v933 = vld [vmem:[#allocation9 + $0x34] sm:$0xf]
      %v934 = vld [vmem:[#allocation9 + $0x38] sm:$0xf]
      %v935 = vld [vmem:[#allocation9 + $0x3c] sm:$0xf]
      %v936 = vld [vmem:[%s6] sm:$0x1]
      %v938 = vlaneseq
      %v939 = vshrl.u32 %v938, 7
      %v940 = vsub.s32 0, %v939
      %v941 = vrot.slane %v936, %v940
      %v959 = vunpack.c.l.b16 %v920
      %v960 = vunpack.c.l.b16 %v921
      %v961 = vunpack.c.l.b16 %v922
      %v962 = vunpack.c.l.b16 %v923
      %v963 = vunpack.c.l.b16 %v924
      %v964 = vunpack.c.l.b16 %v925
      %v965 = vunpack.c.l.b16 %v926
      %v966 = vunpack.c.l.b16 %v927
      %v967 = vunpack.c.l.b16 %v928
      %v968 = vunpack.c.l.b16 %v929
      %v969 = vunpack.c.l.b16 %v930
      %v970 = vunpack.c.l.b16 %v931
      %v971 = vunpack.c.l.b16 %v932
      %v972 = vunpack.c.l.b16 %v933
      %v973 = vunpack.c.l.b16 %v934
      %v974 = vunpack.c.l.b16 %v935
      %v975 = vpack.c.b16 %v960, %v959
      %v976 = vpack.c.b16 %v962, %v961
      %v977 = vpack.c.b16 %v964, %v963
      %v978 = vpack.c.b16 %v966, %v965
      %v979 = vpack.c.b16 %v968, %v967
      %v980 = vpack.c.b16 %v970, %v969
      %v981 = vpack.c.b16 %v972, %v971
      %v982 = vpack.c.b16 %v974, %v973
      %991 = vmatprep.subr.bf16.mxu0 0
      %992 = vmatpush1.bf16.msra.mxu0 %v982
      %993 = vmatprep.subr.bf16.mxu0 0
      %994 = vmatpush1.bf16.msra.mxu0 %v981
      %995 = vmatprep.subr.bf16.mxu0 0
      %996 = vmatpush1.bf16.msra.mxu0 %v980
      %997 = vmatprep.subr.bf16.mxu0 0
      %998 = vmatpush1.bf16.msra.mxu0 %v979
      %999 = vmatprep.subr.bf16.mxu0 0
      %1000 = vmatpush1.bf16.msra.mxu0 %v978
      %1001 = vmatprep.subr.bf16.mxu0 0
      %1002 = vmatpush1.bf16.msra.mxu0 %v977
      %1003 = vmatprep.subr.bf16.mxu0 0
      %1004 = vmatpush1.bf16.msra.mxu0 %v976
      %1005 = vmatprep.subr.bf16.mxu0 0
      %1006 = vmatpush1.bf16.msra.mxu0 %v975
      %1007 = vmatprep.subr.bf16.mxu0 0
      %1008 = vmatpush2.bf16.msra.mxu0 0
      %1009 = vmatprep.subr.bf16.mxu0 0
      %1010 = vmatpush2.bf16.msra.mxu0 0
      %1011 = vmatprep.subr.bf16.mxu0 0
      %1012 = vmatpush2.bf16.msra.mxu0 0
      %1013 = vmatprep.subr.bf16.mxu0 0
      %1014 = vmatpush2.bf16.msra.mxu0 0
      %1015 = vmatprep.subr.bf16.mxu0 0
      %1016 = vmatpush2.bf16.msra.mxu0 0
      %1017 = vmatprep.subr.bf16.mxu0 0
      %1018 = vmatpush2.bf16.msra.mxu0 0
      %1019 = vmatprep.subr.bf16.mxu0 0
      %1020 = vmatpush2.bf16.msra.mxu0 0
      %1021 = vmatprep.subr.bf16.mxu0 0
      %1022 = vmatpush2.bf16.msra.mxu0 0
      %1023 = vmatprep.mubr.bf16.mxu0 0
      %1024 = vmatmul.mubr.bf16.gmra.mxu0 %v919
      %v1025 = vpop.f32.mrf.mxu0
      %v1026 = vadd.f32 %v941, %v1025
      %v1027 = vpop.f32.mrf.mxu0
      %v1028 = vpop.f32.mrf.mxu0
      %v1029 = vpop.f32.mrf.mxu0
      %1030 = vdwg.mxu0
      %1031 = vst [vmem:[#allocation11] sm:$0xff] %v1026
    $region53: #{tpu_custom_call.1} parent=1 // pred_fallthru
      _
    // Predicated region
    $region54: #{tpu_custom_call.1} parent=1 // pred_check
      _
    $region55: #{tpu_custom_call.1} parent=1 // pred_check_branch
      %1033 = sbr.rel (0) target = $region57
    $region56: #{tpu_custom_call.1} parent=1 // pred_region
      %s1035 = ssub.s32 128, 128
      %1036 = vsyncadd [#allocation5], %s1035
      %s1038 = sshll.u32 [#allocation11], 4
      %s1039 = int_to_ptr.vmem [resolvable:$true] %s1038
      %1041 = dma.vmem_to_hbm [thread:$0]  %s1039, 128, %s7, [#allocation5]
    $region57: #{tpu_custom_call.1} parent=1 // pred_fallthru
      _
    // Predicated region
    $region58: #{tpu_custom_call.1} parent=1 // pred_check
      _
    $region59: #{tpu_custom_call.1} parent=1 // pred_check_branch
      %1043 = sbr.rel (0) target = $region61
    $region60: #{tpu_custom_call.1} parent=1 // pred_region
      %1044 = dma.done [#allocation5], 128
    $region61: #{tpu_custom_call.1} parent=1 // pred_fallthru
      _
    %1045 = vsyncpa [#allocation4], 1
    %1046 = vsyncpa [#allocation7], 1
    %1047 = vsyncpa [#allocation10], 1
    %1048 = vsyncpa [#allocation5], 1

</llo_original>
